<compile_context>
chip_gen: v7x
topology: tpu7x:2x2x1
jax: 0.10.0
libtpu: 0.0.40
codegen_flags: <defaults>
</compile_context>

<pallas_src>
import math

import jax
import jax.numpy as jnp
from jax.experimental import pallas as pl
from jax.experimental.pallas import tpu as pltpu

_LANE = 128


def _silu(v):
    return v * jax.nn.sigmoid(v)


def _round_up(n, m):
    return ((n + m - 1) // m) * m


def _pad2d(a, rows, cols):
    return jnp.pad(a, ((0, rows - a.shape[0]), (0, cols - a.shape[1])))


def _make_skip_mlp_kernel(num_blocks, dot_dtype):
    """Fused SkipMLP kernel for `num_blocks` skip blocks.

    Ref layout: x, z, w_in_x, w_in_z, b_in, [wi, bi, wo, wz, b_fused] * num_blocks, out.
    All weights are stored (in_features, out_features) so the kernel does h @ W + b.
    """

    def kernel(*refs):
        x_ref, z_ref, wx_ref, wz_ref, bin_ref = refs[:5]
        out_ref = refs[-1]
        block_refs = refs[5:-1]
        assert len(block_refs) == 5 * num_blocks

        f32 = jnp.float32
        xd = x_ref[...].astype(dot_dtype)
        zd = z_ref[...].astype(dot_dtype)

        # h = silu(in_layer(hstack(x, z)))  -- concatenation replaced by split matmul.
        h = _silu(
            jnp.dot(xd, wx_ref[...], preferred_element_type=f32)
            + jnp.dot(zd, wz_ref[...], preferred_element_type=f32)
            + bin_ref[...]
        )

        for i in range(num_blocks):
            wi, bi, wo, wzb, bsum = block_refs[5 * i : 5 * i + 5]
            # h = outer(silu(inner(h))) + linear_z(z)   (bo + bz folded into bsum)
            t = _silu(
                jnp.dot(h.astype(dot_dtype), wi[...], preferred_element_type=f32)
                + bi[...]
            )
            h = (
                jnp.dot(t.astype(dot_dtype), wo[...], preferred_element_type=f32)
                + jnp.dot(zd, wzb[...], preferred_element_type=f32)
                + bsum[...]
            )
            if i < num_blocks - 1:
                h = _silu(h)

        out_ref[...] = h.astype(out_ref.dtype)

    return kernel


def init_skip_mlp_params(key, data_dim, latent_dim, hidden_dims, output_dim):
    """Parameter init matching the PyTorch module's shapes.

    Linear(in_f, out_f): weight stored as (in_f, out_f), bias as (1, out_f),
    init U(-1/sqrt(in_f), 1/sqrt(in_f)) like PyTorch's default.
    """

    def linear(k, in_f, out_f):
        kw, kb = jax.random.split(k)
        bound = 1.0 / math.sqrt(in_f)
        w = jax.random.uniform(kw, (in_f, out_f), jnp.float32, -bound, bound)
        b = jax.random.uniform(kb, (1, out_f), jnp.float32, -bound, bound)
        return w, b

    dims = list(hidden_dims) + [output_dim]
    n_blocks = len(dims) - 1  # includes the final output block

    keys = jax.random.split(key, 1 + 3 * n_blocks)
    params = {"in": linear(keys[0], 2 * data_dim + latent_dim, hidden_dims[0])}

    blocks = []
    for i in range(n_blocks):
        k_inner, k_outer, k_z = keys[1 + 3 * i : 1 + 3 * i + 3]
        inner = linear(k_inner, dims[i], dims[i + 1])
        outer = linear(k_outer, dims[i + 1], dims[i + 1])
        lin_z = linear(k_z, latent_dim, dims[i + 1])
        blocks.append((inner, outer, lin_z))
    params["blocks"] = blocks
    return params


def skip_mlp_forward(params, x, z, *, use_bf16=True, max_tile_b=512):
    """Fused Pallas forward. x: (B, 2*data_dim), z: (B, latent_dim) -> (B, output_dim)."""
    f32 = jnp.float32
    dot_dtype = jnp.bfloat16 if use_bf16 else f32

    B, dx = x.shape
    _, dz = z.shape
    w_in, b_in = params["in"]
    blocks = params["blocks"]
    num_blocks = len(blocks)
    output_dim = blocks[-1][1][0].shape[1]

    # --- batch tiling (M multiple of 128 so the MXU M dim is filled) -----------------
    tile_b = min(max_tile_b, _round_up(B, _LANE))
    b_p = _round_up(B, tile_b)
    grid = (b_p // tile_b,)

    # --- lane-dense padding of features ----------------------------------------------
    dx_p = _round_up(dx, _LANE)
    dz_p = _round_up(dz, _LANE)
    x_p = _pad2d(x.astype(f32), b_p, dx_p)
    z_p = _pad2d(z.astype(f32), b_p, dz_p)

    h0 = w_in.shape[1]
    h0_p = _round_up(h0, _LANE)
    wx = _pad2d(w_in[:dx], dx_p, h0_p).astype(dot_dtype)     # x part of in_layer
    wz0 = _pad2d(w_in[dx:], dz_p, h0_p).astype(dot_dtype)    # z part of in_layer
    bin_p = _pad2d(b_in, 1, h0_p)

    args = [x_p, z_p, wx, wz0, bin_p]
    layer_dims = [(dx_p, h0_p), (dz_p, h0_p)]                # (K, N) per matmul
    trans_cols = h0_p                                        # silu column count
    prev_p = h0_p
    for i, ((wi, bi), (wo, bo), (wzb, bz)) in enumerate(blocks):
        d_out = wi.shape[1]
        d_out_p = _round_up(d_out, _LANE)
        args.append(_pad2d(wi, prev_p, d_out_p).astype(dot_dtype))
        args.append(_pad2d(bi, 1, d_out_p))
        args.append(_pad2d(wo, d_out_p, d_out_p).astype(dot_dtype))
        args.append(_pad2d(wzb, dz_p, d_out_p).astype(dot_dtype))
        args.append(_pad2d(bo + bz, 1, d_out_p))              # fold bo + bz
        layer_dims += [(prev_p, d_out_p), (d_out_p, d_out_p), (dz_p, d_out_p)]
        trans_cols += d_out_p                                  # inner silu
        if i < num_blocks - 1:
            trans_cols += d_out_p                              # post-block silu
        prev_p = d_out_p
    out_p = prev_p

    # --- BlockSpecs: tiled activations, grid-resident weights ------------------------
    def act_spec(fdim):
        return pl.BlockSpec((tile_b, fdim), lambda i: (i, 0))

    def resident_spec(shape):
        return pl.BlockSpec(shape, lambda i: (0, 0))

    in_specs = [act_spec(dx_p), act_spec(dz_p)]
    in_specs += [resident_spec(a.shape) for a in args[2:]]
    out_spec = pl.BlockSpec((tile_b, out_p), lambda i: (i, 0))

    # --- advisory cost estimate -------------------------------------------------------
    flops = 2 * b_p * sum(k * n for k, n in layer_dims)
    transcendentals = b_p * trans_cols
    bytes_accessed = (
        sum(int(math.prod(a.shape)) * a.dtype.itemsize for a in args)
        + b_p * out_p * 4
    )
    cost = pl.CostEstimate(
        flops=flops, transcendentals=transcendentals, bytes_accessed=bytes_accessed
    )

    kernel = _make_skip_mlp_kernel(num_blocks, dot_dtype)
    out = pl.pallas_call(
        kernel,
        out_shape=jax.ShapeDtypeStruct((b_p, out_p), f32),
        grid=grid,
        in_specs=in_specs,
        out_specs=out_spec,
        compiler_params=pltpu.CompilerParams(dimension_semantics=("parallel",)),
        cost_estimate=cost,
    )(*args)

    return out[:B, :output_dim]


def skip_mlp_reference(params, x, z):
    """Pure-JAX f32 reference mirroring the PyTorch forward exactly."""
    w_in, b_in = params["in"]
    h = jax.nn.silu(jnp.concatenate([x, z], axis=1) @ w_in + b_in)
    blocks = params["blocks"]
    for i, ((wi, bi), (wo, bo), (wz, bz)) in enumerate(blocks):
        h = (jax.nn.silu(h @ wi + bi) @ wo + bo) + (z @ wz + bz)
        if i < len(blocks) - 1:
            h = jax.nn.silu(h)
    return h


if __name__ == "__main__":
    # Small shapes consistent with the module's forward.
    batch = 8
    data_dim = 8          # x has 2 * data_dim features
    latent_dim = 8
    hidden_dims = [32, 32]
    output_dim = 16

    key = jax.random.PRNGKey(0)
    k_params, k_x, k_z = jax.random.split(key, 3)

    params = init_skip_mlp_params(k_params, data_dim, latent_dim, hidden_dims, output_dim)
    x = jax.random.normal(k_x, (batch, 2 * data_dim), jnp.float32)
    z = jax.random.normal(k_z, (batch, latent_dim), jnp.float32)

    ref = jax.block_until_ready(skip_mlp_reference(params, x, z))

    # Exact-path check (f32 MXU inputs): must match the reference tightly.
    out_f32 = jax.block_until_ready(skip_mlp_forward(params, x, z, use_bf16=False))
    assert out_f32.shape == (batch, output_dim)
    assert jnp.allclose(out_f32, ref, atol=1e-5, rtol=1e-5), "f32 Pallas kernel mismatch"

    # Fast path (bf16 MXU inputs, f32 accumulation): looser tolerance vs f32 reference.
    out_bf16 = jax.block_until_ready(skip_mlp_forward(params, x, z, use_bf16=True))
    assert out_bf16.shape == (batch, output_dim)
    assert jnp.allclose(out_bf16, ref, atol=5e-2, rtol=5e-2), "bf16 Pallas kernel mismatch"

    print("KERNEL_OK")
</pallas_src>

<mosaic_0001>
module attributes {stable_mosaic.version = 11 : i64} {
  func.func @kernel(%arg0: i32, %arg1: memref<128x128xf32, #tpu.memory_space<vmem>>, %arg2: memref<128x128xf32, #tpu.memory_space<vmem>>, %arg3: memref<128x128xf32, #tpu.memory_space<vmem>>, %arg4: memref<128x128xf32, #tpu.memory_space<vmem>>, %arg5: memref<1x128xf32, #tpu.memory_space<vmem>>, %arg6: memref<128x128xf32, #tpu.memory_space<vmem>>, %arg7: memref<1x128xf32, #tpu.memory_space<vmem>>, %arg8: memref<128x128xf32, #tpu.memory_space<vmem>>, %arg9: memref<128x128xf32, #tpu.memory_space<vmem>>, %arg10: memref<1x128xf32, #tpu.memory_space<vmem>>, %arg11: memref<128x128xf32, #tpu.memory_space<vmem>>, %arg12: memref<1x128xf32, #tpu.memory_space<vmem>>, %arg13: memref<128x128xf32, #tpu.memory_space<vmem>>, %arg14: memref<128x128xf32, #tpu.memory_space<vmem>>, %arg15: memref<1x128xf32, #tpu.memory_space<vmem>>, %arg16: memref<128x128xf32, #tpu.memory_space<vmem>>) attributes {dimension_semantics = [#tpu.dimension_semantics<parallel>], iteration_bounds = array<i64: 1>, scalar_prefetch = 0 : i64, scratch_operands = 0 : i64, tpu.core_type = #tpu.core_type<tc>, window_params = [{transform_indices = @transform_0, window_bounds = array<i64: 128, 128>}, {transform_indices = @transform_1, window_bounds = array<i64: 128, 128>}, {pipeline_mode = #tpu.pipeline_mode<synchronous>, transform_indices = @transform_2, window_bounds = array<i64: 128, 128>}, {pipeline_mode = #tpu.pipeline_mode<synchronous>, transform_indices = @transform_3, window_bounds = array<i64: 128, 128>}, {pipeline_mode = #tpu.pipeline_mode<synchronous>, transform_indices = @transform_4, window_bounds = array<i64: 1, 128>}, {pipeline_mode = #tpu.pipeline_mode<synchronous>, transform_indices = @transform_5, window_bounds = array<i64: 128, 128>}, {pipeline_mode = #tpu.pipeline_mode<synchronous>, transform_indices = @transform_6, window_bounds = array<i64: 1, 128>}, {pipeline_mode = #tpu.pipeline_mode<synchronous>, transform_indices = @transform_7, window_bounds = array<i64: 128, 128>}, {pipeline_mode = #tpu.pipeline_mode<synchronous>, transform_indices = @transform_8, window_bounds = array<i64: 128, 128>}, {pipeline_mode = #tpu.pipeline_mode<synchronous>, transform_indices = @transform_9, window_bounds = array<i64: 1, 128>}, {pipeline_mode = #tpu.pipeline_mode<synchronous>, transform_indices = @transform_10, window_bounds = array<i64: 128, 128>}, {pipeline_mode = #tpu.pipeline_mode<synchronous>, transform_indices = @transform_11, window_bounds = array<i64: 1, 128>}, {pipeline_mode = #tpu.pipeline_mode<synchronous>, transform_indices = @transform_12, window_bounds = array<i64: 128, 128>}, {pipeline_mode = #tpu.pipeline_mode<synchronous>, transform_indices = @transform_13, window_bounds = array<i64: 128, 128>}, {pipeline_mode = #tpu.pipeline_mode<synchronous>, transform_indices = @transform_14, window_bounds = array<i64: 1, 128>}, {transform_indices = @transform_15, window_bounds = array<i64: 128, 128>}]} {
    %c0 = arith.constant 0 : index
    %c0_0 = arith.constant 0 : index
    %0 = vector.load %arg1[%c0, %c0_0] : memref<128x128xf32, #tpu.memory_space<vmem>>, vector<128x128xf32>
    %c0_1 = arith.constant 0 : index
    %c0_2 = arith.constant 0 : index
    %1 = vector.load %arg2[%c0_1, %c0_2] : memref<128x128xf32, #tpu.memory_space<vmem>>, vector<128x128xf32>
    %c0_3 = arith.constant 0 : index
    %c0_4 = arith.constant 0 : index
    %2 = vector.load %arg3[%c0_3, %c0_4] : memref<128x128xf32, #tpu.memory_space<vmem>>, vector<128x128xf32>
    %cst = arith.constant dense<0.000000e+00> : vector<128x128xf32>
    %3 = tpu.matmul %0, %2, %cst {dimension_numbers = #tpu.dot_dimension_numbers<[1], [0], [0], [1], [0, 0, 1, 1], [], []>} : vector<128x128xf32>, vector<128x128xf32>, vector<128x128xf32> -> vector<128x128xf32>
    %c0_5 = arith.constant 0 : index
    %c0_6 = arith.constant 0 : index
    %4 = vector.load %arg4[%c0_5, %c0_6] : memref<128x128xf32, #tpu.memory_space<vmem>>, vector<128x128xf32>
    %cst_7 = arith.constant dense<0.000000e+00> : vector<128x128xf32>
    %5 = tpu.matmul %1, %4, %cst_7 {dimension_numbers = #tpu.dot_dimension_numbers<[1], [0], [0], [1], [0, 0, 1, 1], [], []>} : vector<128x128xf32>, vector<128x128xf32>, vector<128x128xf32> -> vector<128x128xf32>
    %6 = arith.addf %3, %5 : vector<128x128xf32>
    %c0_8 = arith.constant 0 : index
    %c0_9 = arith.constant 0 : index
    %7 = vector.load %arg5[%c0_8, %c0_9] : memref<1x128xf32, #tpu.memory_space<vmem>>, vector<1x128xf32>
    %8 = vector.broadcast %7 : vector<1x128xf32> to vector<128x128xf32>
    %9 = arith.addf %6, %8 : vector<128x128xf32>
    %10 = arith.negf %9 : vector<128x128xf32>
    %11 = math.exp %10 : vector<128x128xf32>
    %cst_10 = arith.constant 1.000000e+00 : f32
    %12 = vector.broadcast %cst_10 : f32 to vector<128x128xf32>
    %13 = arith.addf %12, %11 : vector<128x128xf32>
    %14 = arith.divf %12, %13 : vector<128x128xf32>
    %15 = arith.mulf %9, %14 : vector<128x128xf32>
    %c0_11 = arith.constant 0 : index
    %c0_12 = arith.constant 0 : index
    %16 = vector.load %arg6[%c0_11, %c0_12] : memref<128x128xf32, #tpu.memory_space<vmem>>, vector<128x128xf32>
    %cst_13 = arith.constant dense<0.000000e+00> : vector<128x128xf32>
    %17 = tpu.matmul %15, %16, %cst_13 {dimension_numbers = #tpu.dot_dimension_numbers<[1], [0], [0], [1], [0, 0, 1, 1], [], []>} : vector<128x128xf32>, vector<128x128xf32>, vector<128x128xf32> -> vector<128x128xf32>
    %c0_14 = arith.constant 0 : index
    %c0_15 = arith.constant 0 : index
    %18 = vector.load %arg7[%c0_14, %c0_15] : memref<1x128xf32, #tpu.memory_space<vmem>>, vector<1x128xf32>
    %19 = vector.broadcast %18 : vector<1x128xf32> to vector<128x128xf32>
    %20 = arith.addf %17, %19 : vector<128x128xf32>
    %21 = arith.negf %20 : vector<128x128xf32>
    %22 = math.exp %21 : vector<128x128xf32>
    %cst_16 = arith.constant 1.000000e+00 : f32
    %23 = vector.broadcast %cst_16 : f32 to vector<128x128xf32>
    %24 = arith.addf %23, %22 : vector<128x128xf32>
    %25 = arith.divf %23, %24 : vector<128x128xf32>
    %26 = arith.mulf %20, %25 : vector<128x128xf32>
    %c0_17 = arith.constant 0 : index
    %c0_18 = arith.constant 0 : index
    %27 = vector.load %arg8[%c0_17, %c0_18] : memref<128x128xf32, #tpu.memory_space<vmem>>, vector<128x128xf32>
    %cst_19 = arith.constant dense<0.000000e+00> : vector<128x128xf32>
    %28 = tpu.matmul %26, %27, %cst_19 {dimension_numbers = #tpu.dot_dimension_numbers<[1], [0], [0], [1], [0, 0, 1, 1], [], []>} : vector<128x128xf32>, vector<128x128xf32>, vector<128x128xf32> -> vector<128x128xf32>
    %c0_20 = arith.constant 0 : index
    %c0_21 = arith.constant 0 : index
    %29 = vector.load %arg9[%c0_20, %c0_21] : memref<128x128xf32, #tpu.memory_space<vmem>>, vector<128x128xf32>
    %cst_22 = arith.constant dense<0.000000e+00> : vector<128x128xf32>
    %30 = tpu.matmul %1, %29, %cst_22 {dimension_numbers = #tpu.dot_dimension_numbers<[1], [0], [0], [1], [0, 0, 1, 1], [], []>} : vector<128x128xf32>, vector<128x128xf32>, vector<128x128xf32> -> vector<128x128xf32>
    %31 = arith.addf %28, %30 : vector<128x128xf32>
    %c0_23 = arith.constant 0 : index
    %c0_24 = arith.constant 0 : index
    %32 = vector.load %arg10[%c0_23, %c0_24] : memref<1x128xf32, #tpu.memory_space<vmem>>, vector<1x128xf32>
    %33 = vector.broadcast %32 : vector<1x128xf32> to vector<128x128xf32>
    %34 = arith.addf %31, %33 : vector<128x128xf32>
    %35 = arith.negf %34 : vector<128x128xf32>
    %36 = math.exp %35 : vector<128x128xf32>
    %cst_25 = arith.constant 1.000000e+00 : f32
    %37 = vector.broadcast %cst_25 : f32 to vector<128x128xf32>
    %38 = arith.addf %37, %36 : vector<128x128xf32>
    %39 = arith.divf %37, %38 : vector<128x128xf32>
    %40 = arith.mulf %34, %39 : vector<128x128xf32>
    %c0_26 = arith.constant 0 : index
    %c0_27 = arith.constant 0 : index
    %41 = vector.load %arg11[%c0_26, %c0_27] : memref<128x128xf32, #tpu.memory_space<vmem>>, vector<128x128xf32>
    %cst_28 = arith.constant dense<0.000000e+00> : vector<128x128xf32>
    %42 = tpu.matmul %40, %41, %cst_28 {dimension_numbers = #tpu.dot_dimension_numbers<[1], [0], [0], [1], [0, 0, 1, 1], [], []>} : vector<128x128xf32>, vector<128x128xf32>, vector<128x128xf32> -> vector<128x128xf32>
    %c0_29 = arith.constant 0 : index
    %c0_30 = arith.constant 0 : index
    %43 = vector.load %arg12[%c0_29, %c0_30] : memref<1x128xf32, #tpu.memory_space<vmem>>, vector<1x128xf32>
    %44 = vector.broadcast %43 : vector<1x128xf32> to vector<128x128xf32>
    %45 = arith.addf %42, %44 : vector<128x128xf32>
    %46 = arith.negf %45 : vector<128x128xf32>
    %47 = math.exp %46 : vector<128x128xf32>
    %cst_31 = arith.constant 1.000000e+00 : f32
    %48 = vector.broadcast %cst_31 : f32 to vector<128x128xf32>
    %49 = arith.addf %48, %47 : vector<128x128xf32>
    %50 = arith.divf %48, %49 : vector<128x128xf32>
    %51 = arith.mulf %45, %50 : vector<128x128xf32>
    %c0_32 = arith.constant 0 : index
    %c0_33 = arith.constant 0 : index
    %52 = vector.load %arg13[%c0_32, %c0_33] : memref<128x128xf32, #tpu.memory_space<vmem>>, vector<128x128xf32>
    %cst_34 = arith.constant dense<0.000000e+00> : vector<128x128xf32>
    %53 = tpu.matmul %51, %52, %cst_34 {dimension_numbers = #tpu.dot_dimension_numbers<[1], [0], [0], [1], [0, 0, 1, 1], [], []>} : vector<128x128xf32>, vector<128x128xf32>, vector<128x128xf32> -> vector<128x128xf32>
    %c0_35 = arith.constant 0 : index
    %c0_36 = arith.constant 0 : index
    %54 = vector.load %arg14[%c0_35, %c0_36] : memref<128x128xf32, #tpu.memory_space<vmem>>, vector<128x128xf32>
    %cst_37 = arith.constant dense<0.000000e+00> : vector<128x128xf32>
    %55 = tpu.matmul %1, %54, %cst_37 {dimension_numbers = #tpu.dot_dimension_numbers<[1], [0], [0], [1], [0, 0, 1, 1], [], []>} : vector<128x128xf32>, vector<128x128xf32>, vector<128x128xf32> -> vector<128x128xf32>
    %56 = arith.addf %53, %55 : vector<128x128xf32>
    %c0_38 = arith.constant 0 : index
    %c0_39 = arith.constant 0 : index
    %57 = vector.load %arg15[%c0_38, %c0_39] : memref<1x128xf32, #tpu.memory_space<vmem>>, vector<1x128xf32>
    %58 = vector.broadcast %57 : vector<1x128xf32> to vector<128x128xf32>
    %59 = arith.addf %56, %58 : vector<128x128xf32>
    %c0_40 = arith.constant 0 : index
    %c0_41 = arith.constant 0 : index
    %60 = vector.load %arg16[%c0_40, %c0_41] : memref<128x128xf32, #tpu.memory_space<vmem>>, vector<128x128xf32>
    tpu.vector_store %arg16[%c0_40, %c0_41], %59 {strides = array<i32>} : memref<128x128xf32, #tpu.memory_space<vmem>>, vector<128x128xf32>,
    return
  }
  func.func @transform_0(%arg0: i32) -> (i32, i32) {
    %c0_i32 = arith.constant 0 : i32
    %c0_i32_0 = arith.constant 0 : i32
    return %arg0, %c0_i32 : i32, i32
  }
  func.func @transform_1(%arg0: i32) -> (i32, i32) {
    %c0_i32 = arith.constant 0 : i32
    %c0_i32_0 = arith.constant 0 : i32
    return %arg0, %c0_i32 : i32, i32
  }
  func.func @transform_2(%arg0: i32) -> (i32, i32) {
    %c0_i32 = arith.constant 0 : i32
    %c0_i32_0 = arith.constant 0 : i32
    %c0_i32_1 = arith.constant 0 : i32
    return %c0_i32, %c0_i32_0 : i32, i32
  }
  func.func @transform_3(%arg0: i32) -> (i32, i32) {
    %c0_i32 = arith.constant 0 : i32
    %c0_i32_0 = arith.constant 0 : i32
    %c0_i32_1 = arith.constant 0 : i32
    return %c0_i32, %c0_i32_0 : i32, i32
  }
  func.func @transform_4(%arg0: i32) -> (i32, i32) {
    %c0_i32 = arith.constant 0 : i32
    %c0_i32_0 = arith.constant 0 : i32
    %c0_i32_1 = arith.constant 0 : i32
    return %c0_i32, %c0_i32_0 : i32, i32
  }
  func.func @transform_5(%arg0: i32) -> (i32, i32) {
    %c0_i32 = arith.constant 0 : i32
    %c0_i32_0 = arith.constant 0 : i32
    %c0_i32_1 = arith.constant 0 : i32
    return %c0_i32, %c0_i32_0 : i32, i32
  }
  func.func @transform_6(%arg0: i32) -> (i32, i32) {
    %c0_i32 = arith.constant 0 : i32
    %c0_i32_0 = arith.constant 0 : i32
    %c0_i32_1 = arith.constant 0 : i32
    return %c0_i32, %c0_i32_0 : i32, i32
  }
  func.func @transform_7(%arg0: i32) -> (i32, i32) {
    %c0_i32 = arith.constant 0 : i32
    %c0_i32_0 = arith.constant 0 : i32
    %c0_i32_1 = arith.constant 0 : i32
    return %c0_i32, %c0_i32_0 : i32, i32
  }
  func.func @transform_8(%arg0: i32) -> (i32, i32) {
    %c0_i32 = arith.constant 0 : i32
    %c0_i32_0 = arith.constant 0 : i32
    %c0_i32_1 = arith.constant 0 : i32
    return %c0_i32, %c0_i32_0 : i32, i32
  }
  func.func @transform_9(%arg0: i32) -> (i32, i32) {
    %c0_i32 = arith.constant 0 : i32
    %c0_i32_0 = arith.constant 0 : i32
    %c0_i32_1 = arith.constant 0 : i32
    return %c0_i32, %c0_i32_0 : i32, i32
  }
  func.func @transform_10(%arg0: i32) -> (i32, i32) {
    %c0_i32 = arith.constant 0 : i32
    %c0_i32_0 = arith.constant 0 : i32
    %c0_i32_1 = arith.constant 0 : i32
    return %c0_i32, %c0_i32_0 : i32, i32
  }
  func.func @transform_11(%arg0: i32) -> (i32, i32) {
    %c0_i32 = arith.constant 0 : i32
    %c0_i32_0 = arith.constant 0 : i32
    %c0_i32_1 = arith.constant 0 : i32
    return %c0_i32, %c0_i32_0 : i32, i32
  }
  func.func @transform_12(%arg0: i32) -> (i32, i32) {
    %c0_i32 = arith.constant 0 : i32
    %c0_i32_0 = arith.constant 0 : i32
    %c0_i32_1 = arith.constant 0 : i32
    return %c0_i32, %c0_i32_0 : i32, i32
  }
  func.func @transform_13(%arg0: i32) -> (i32, i32) {
    %c0_i32 = arith.constant 0 : i32
    %c0_i32_0 = arith.constant 0 : i32
    %c0_i32_1 = arith.constant 0 : i32
    return %c0_i32, %c0_i32_0 : i32, i32
  }
  func.func @transform_14(%arg0: i32) -> (i32, i32) {
    %c0_i32 = arith.constant 0 : i32
    %c0_i32_0 = arith.constant 0 : i32
    %c0_i32_1 = arith.constant 0 : i32
    return %c0_i32, %c0_i32_0 : i32, i32
  }
  func.func @transform_15(%arg0: i32) -> (i32, i32) {
    %c0_i32 = arith.constant 0 : i32
    %c0_i32_0 = arith.constant 0 : i32
    return %arg0, %c0_i32 : i32, i32
  }
}

</mosaic_0001>

<llo_original>
// kernel: tpu_custom_call.1
$region0: #{tpu_custom_call.1}
  #allocation0 [shape = 'u32[]', space=smem, size = 0x4, offset = 0x4, fixed_abs, tag = 'smem constant byte address 0x4 - core index']
  #allocation1 [shape = 'u32[144,128]{1,0:T(1,128)}', space=vmem, size = 0x12000, scoped, tag = 'internal scratch']
  %s0 = inlined_call_operand.hbm [shape: f32[128,128], index: 0, kind: input, shape index: {}]
  %s1 = inlined_call_operand.hbm [shape: f32[128,128], index: 1, kind: input, shape index: {}]
  %s2 = inlined_call_operand.hbm [shape: f32[128,128], index: 2, kind: input, shape index: {}]
  %s3 = inlined_call_operand.hbm [shape: f32[128,128], index: 3, kind: input, shape index: {}]
  %s4 = inlined_call_operand.vmem [shape: f32[1,128], index: 4, kind: input, shape index: {}]
  %s5 = inlined_call_operand.hbm [shape: f32[128,128], index: 5, kind: input, shape index: {}]
  %s6 = inlined_call_operand.vmem [shape: f32[1,128], index: 6, kind: input, shape index: {}]
  %s7 = inlined_call_operand.hbm [shape: f32[128,128], index: 7, kind: input, shape index: {}]
  %s8 = inlined_call_operand.hbm [shape: f32[128,128], index: 8, kind: input, shape index: {}]
  %s9 = inlined_call_operand.vmem [shape: f32[1,128], index: 9, kind: input, shape index: {}]
  %s10 = inlined_call_operand.hbm [shape: f32[128,128], index: 10, kind: input, shape index: {}]
  %s11 = inlined_call_operand.vmem [shape: f32[1,128], index: 11, kind: input, shape index: {}]
  %s12 = inlined_call_operand.hbm [shape: f32[128,128], index: 12, kind: input, shape index: {}]
  %s13 = inlined_call_operand.hbm [shape: f32[128,128], index: 13, kind: input, shape index: {}]
  %s14 = inlined_call_operand.vmem [shape: f32[1,128], index: 14, kind: input, shape index: {}]
  %s15 = inlined_call_operand.hbm [shape: f32[128,128], index: 15, kind: output, shape index: {}]
  %s16 = sld [smem:[#allocation0]]
  $region110: #{tpu_custom_call.1} parent=0
    _
  %s18 = ssub.s32 1, %s16
  %s19 = scalar_select 0, %s18, %s16
  $region1: #{tpu_custom_call.1} parent=0
    #allocation2 [shape = 'u8[65536]{0}', space=vmem, size = 0x10000, scoped, tag = 'input window, operand 0, single buffered']
    #allocation3 [shape = 's32[1]{0}', space=sflag, size = 0x4, scoped, tag = 'scoped memory for tpu_custom_call.1']
    #allocation4 [shape = 's32[1]{0}', space=sflag, size = 0x4, scoped, tag = 'scoped memory for tpu_custom_call.1']
    #allocation5 [shape = 'u8[65536]{0}', space=vmem, size = 0x10000, scoped, tag = 'input window, operand 1, single buffered']
    #allocation6 [shape = 's32[1]{0}', space=sflag, size = 0x4, scoped, tag = 'scoped memory for tpu_custom_call.1']
    #allocation7 [shape = 'u8[65536]{0}', space=vmem, size = 0x10000, scoped, tag = 'input window, operand 2, single buffered']
    #allocation8 [shape = 'u8[65536]{0}', space=vmem, size = 0x10000, scoped, tag = 'input window, operand 3, single buffered']
    #allocation9 [shape = 's32[1]{0}', space=sflag, size = 0x4, scoped, tag = 'scoped memory for tpu_custom_call.1']
    #allocation10 [shape = 'u8[65536]{0}', space=vmem, size = 0x10000, scoped, tag = 'input window, operand 5, single buffered']
    #allocation11 [shape = 'u8[65536]{0}', space=vmem, size = 0x10000, scoped, tag = 'input window, operand 7, single buffered']
    #allocation12 [shape = 's32[1]{0}', space=sflag, size = 0x4, scoped, tag = 'scoped memory for tpu_custom_call.1']
    #allocation13 [shape = 'u8[65536]{0}', space=vmem, size = 0x10000, scoped, tag = 'input window, operand 8, single buffered']
    #allocation14 [shape = 'u8[65536]{0}', space=vmem, size = 0x10000, scoped, tag = 'input window, operand 10, single buffered']
    #allocation15 [shape = 's32[1]{0}', space=sflag, size = 0x4, scoped, tag = 'scoped memory for tpu_custom_call.1']
    #allocation16 [shape = 'u8[65536]{0}', space=vmem, size = 0x10000, scoped, tag = 'input window, operand 12, single buffered']
    #allocation17 [shape = 'u8[65536]{0}', space=vmem, size = 0x10000, scoped, tag = 'input window, operand 13, single buffered']
    #allocation18 [shape = 's32[1]{0}', space=sflag, size = 0x4, scoped, tag = 'scoped memory for tpu_custom_call.1']
    #allocation19 [shape = 'u8[65536]{0}', space=vmem, size = 0x10000, scoped, tag = 'output window, operand 0, single buffered']
    %20 = vsyncpa [#allocation3], 0
    %21 = vsyncpa [#allocation6], 0
    %22 = vsyncpa [#allocation9], 0
    %23 = vsyncpa [#allocation12], 0
    %24 = vsyncpa [#allocation15], 0
    %25 = vsyncpa [#allocation18], 0
    %26 = vsyncpa [#allocation4], 0
    // Predicated region
    $region2: #{tpu_custom_call.1} parent=1 // pred_check
      _
    $region3: #{tpu_custom_call.1} parent=1 // pred_check_branch
      %28 = sbr.rel (0) target = $region5
    $region4: #{tpu_custom_call.1} parent=1 // pred_region
      %s30 = ssub.s32 2048, 2048
      %31 = vsyncadd [#allocation3], %s30
      %s32 = sshll.u32 [#allocation2], 4
      %s33 = int_to_ptr.vmem [resolvable:$true] %s32
      %38 = dma.hbm_to_vmem [thread:$0]  %s0, 2048, %s33, [#allocation3], 128, 128, 8
    $region5: #{tpu_custom_call.1} parent=1 // pred_fallthru
      _
    // Predicated region
    $region6: #{tpu_custom_call.1} parent=1 // pred_check
      _
    $region7: #{tpu_custom_call.1} parent=1 // pred_check_branch
      %40 = sbr.rel (0) target = $region9
    $region8: #{tpu_custom_call.1} parent=1 // pred_region
      %s42 = ssub.s32 2048, 2048
      %43 = vsyncadd [#allocation6], %s42
      %s44 = sshll.u32 [#allocation5], 4
      %s45 = int_to_ptr.vmem [resolvable:$true] %s44
      %50 = dma.hbm_to_vmem [thread:$0]  %s1, 2048, %s45, [#allocation6], 128, 128, 8
    $region9: #{tpu_custom_call.1} parent=1 // pred_fallthru
      _
    // Predicated region
    $region10: #{tpu_custom_call.1} parent=1 // pred_check
      _
    $region11: #{tpu_custom_call.1} parent=1 // pred_check_branch
      %52 = sbr.rel (0) target = $region13
    $region12: #{tpu_custom_call.1} parent=1 // pred_region
      %s54 = ssub.s32 2048, 2048
      %55 = vsyncadd [#allocation6], %s54
      %s56 = sshll.u32 [#allocation7], 4
      %s57 = int_to_ptr.vmem [resolvable:$true] %s56
      %62 = dma.hbm_to_vmem [thread:$0]  %s2, 2048, %s57, [#allocation6], 128, 128, 8
    $region13: #{tpu_custom_call.1} parent=1 // pred_fallthru
      _
    // Predicated region
    $region14: #{tpu_custom_call.1} parent=1 // pred_check
      _
    $region15: #{tpu_custom_call.1} parent=1 // pred_check_branch
      %64 = sbr.rel (0) target = $region17
    $region16: #{tpu_custom_call.1} parent=1 // pred_region
      %s66 = ssub.s32 2048, 2048
      %67 = vsyncadd [#allocation9], %s66
      %s68 = sshll.u32 [#allocation8], 4
      %s69 = int_to_ptr.vmem [resolvable:$true] %s68
      %74 = dma.hbm_to_vmem [thread:$0]  %s3, 2048, %s69, [#allocation9], 128, 128, 8
    $region17: #{tpu_custom_call.1} parent=1 // pred_fallthru
      _
    // Predicated region
    $region18: #{tpu_custom_call.1} parent=1 // pred_check
      _
    $region19: #{tpu_custom_call.1} parent=1 // pred_check_branch
      %76 = sbr.rel (0) target = $region21
    $region20: #{tpu_custom_call.1} parent=1 // pred_region
      _
    $region21: #{tpu_custom_call.1} parent=1 // pred_fallthru
      _
    // Predicated region
    $region22: #{tpu_custom_call.1} parent=1 // pred_check
      _
    $region23: #{tpu_custom_call.1} parent=1 // pred_check_branch
      %78 = sbr.rel (0) target = $region25
    $region24: #{tpu_custom_call.1} parent=1 // pred_region
      %s80 = ssub.s32 2048, 2048
      %81 = vsyncadd [#allocation9], %s80
      %s82 = sshll.u32 [#allocation10], 4
      %s83 = int_to_ptr.vmem [resolvable:$true] %s82
      %88 = dma.hbm_to_vmem [thread:$0]  %s5, 2048, %s83, [#allocation9], 128, 128, 8
    $region25: #{tpu_custom_call.1} parent=1 // pred_fallthru
      _
    // Predicated region
    $region26: #{tpu_custom_call.1} parent=1 // pred_check
      _
    $region27: #{tpu_custom_call.1} parent=1 // pred_check_branch
      %90 = sbr.rel (0) target = $region29
    $region28: #{tpu_custom_call.1} parent=1 // pred_region
      _
    $region29: #{tpu_custom_call.1} parent=1 // pred_fallthru
      _
    // Predicated region
    $region30: #{tpu_custom_call.1} parent=1 // pred_check
      _
    $region31: #{tpu_custom_call.1} parent=1 // pred_check_branch
      %92 = sbr.rel (0) target = $region33
    $region32: #{tpu_custom_call.1} parent=1 // pred_region
      %s94 = ssub.s32 2048, 2048
      %95 = vsyncadd [#allocation12], %s94
      %s96 = sshll.u32 [#allocation11], 4
      %s97 = int_to_ptr.vmem [resolvable:$true] %s96
      %102 = dma.hbm_to_vmem [thread:$0]  %s7, 2048, %s97, [#allocation12], 128, 128, 8
    $region33: #{tpu_custom_call.1} parent=1 // pred_fallthru
      _
    // Predicated region
    $region34: #{tpu_custom_call.1} parent=1 // pred_check
      _
    $region35: #{tpu_custom_call.1} parent=1 // pred_check_branch
      %104 = sbr.rel (0) target = $region37
    $region36: #{tpu_custom_call.1} parent=1 // pred_region
      %s106 = ssub.s32 2048, 2048
      %107 = vsyncadd [#allocation12], %s106
      %s108 = sshll.u32 [#allocation13], 4
      %s109 = int_to_ptr.vmem [resolvable:$true] %s108
      %114 = dma.hbm_to_vmem [thread:$0]  %s8, 2048, %s109, [#allocation12], 128, 128, 8
    $region37: #{tpu_custom_call.1} parent=1 // pred_fallthru
      _
    // Predicated region
    $region38: #{tpu_custom_call.1} parent=1 // pred_check
      _
    $region39: #{tpu_custom_call.1} parent=1 // pred_check_branch
      %116 = sbr.rel (0) target = $region41
    $region40: #{tpu_custom_call.1} parent=1 // pred_region
      _
    $region41: #{tpu_custom_call.1} parent=1 // pred_fallthru
      _
    // Predicated region
    $region42: #{tpu_custom_call.1} parent=1 // pred_check
      _
    $region43: #{tpu_custom_call.1} parent=1 // pred_check_branch
      %118 = sbr.rel (0) target = $region45
    $region44: #{tpu_custom_call.1} parent=1 // pred_region
      %s120 = ssub.s32 2048, 2048
      %121 = vsyncadd [#allocation15], %s120
      %s122 = sshll.u32 [#allocation14], 4
      %s123 = int_to_ptr.vmem [resolvable:$true] %s122
      %128 = dma.hbm_to_vmem [thread:$0]  %s10, 2048, %s123, [#allocation15], 128, 128, 8
    $region45: #{tpu_custom_call.1} parent=1 // pred_fallthru
      _
    // Predicated region
    $region46: #{tpu_custom_call.1} parent=1 // pred_check
      _
    $region47: #{tpu_custom_call.1} parent=1 // pred_check_branch
      %130 = sbr.rel (0) target = $region49
    $region48: #{tpu_custom_call.1} parent=1 // pred_region
      _
    $region49: #{tpu_custom_call.1} parent=1 // pred_fallthru
      _
    // Predicated region
    $region50: #{tpu_custom_call.1} parent=1 // pred_check
      _
    $region51: #{tpu_custom_call.1} parent=1 // pred_check_branch
      %132 = sbr.rel (0) target = $region53
    $region52: #{tpu_custom_call.1} parent=1 // pred_region
      %s134 = ssub.s32 2048, 2048
      %135 = vsyncadd [#allocation15], %s134
      %s136 = sshll.u32 [#allocation16], 4
      %s137 = int_to_ptr.vmem [resolvable:$true] %s136
      %142 = dma.hbm_to_vmem [thread:$0]  %s12, 2048, %s137, [#allocation15], 128, 128, 8
    $region53: #{tpu_custom_call.1} parent=1 // pred_fallthru
      _
    // Predicated region
    $region54: #{tpu_custom_call.1} parent=1 // pred_check
      _
    $region55: #{tpu_custom_call.1} parent=1 // pred_check_branch
      %144 = sbr.rel (0) target = $region57
    $region56: #{tpu_custom_call.1} parent=1 // pred_region
      %s146 = ssub.s32 2048, 2048
      %147 = vsyncadd [#allocation18], %s146
      %s148 = sshll.u32 [#allocation17], 4
      %s149 = int_to_ptr.vmem [resolvable:$true] %s148
      %154 = dma.hbm_to_vmem [thread:$0]  %s13, 2048, %s149, [#allocation18], 128, 128, 8
    $region57: #{tpu_custom_call.1} parent=1 // pred_fallthru
      _
    // Predicated region
    $region58: #{tpu_custom_call.1} parent=1 // pred_check
      _
    $region59: #{tpu_custom_call.1} parent=1 // pred_check_branch
      %156 = sbr.rel (0) target = $region61
    $region60: #{tpu_custom_call.1} parent=1 // pred_region
      _
    $region61: #{tpu_custom_call.1} parent=1 // pred_fallthru
      _
    // Predicated region
    $region62: #{tpu_custom_call.1} parent=1 // pred_check
      _
    $region63: #{tpu_custom_call.1} parent=1 // pred_check_branch
      %158 = sbr.rel (0) target = $region65
    $region64: #{tpu_custom_call.1} parent=1 // pred_region
      %159 = dma.done [#allocation3], 2048
    $region65: #{tpu_custom_call.1} parent=1 // pred_fallthru
      _
    // Predicated region
    $region66: #{tpu_custom_call.1} parent=1 // pred_check
      _
    $region67: #{tpu_custom_call.1} parent=1 // pred_check_branch
      %161 = sbr.rel (0) target = $region69
    $region68: #{tpu_custom_call.1} parent=1 // pred_region
      %162 = dma.done [#allocation6], 2048
    $region69: #{tpu_custom_call.1} parent=1 // pred_fallthru
      _
    // Predicated region
    $region70: #{tpu_custom_call.1} parent=1 // pred_check
      _
    $region71: #{tpu_custom_call.1} parent=1 // pred_check_branch
      %164 = sbr.rel (0) target = $region73
    $region72: #{tpu_custom_call.1} parent=1 // pred_region
      %165 = dma.done [#allocation6], 2048
    $region73: #{tpu_custom_call.1} parent=1 // pred_fallthru
      _
    // Predicated region
    $region74: #{tpu_custom_call.1} parent=1 // pred_check
      _
    $region75: #{tpu_custom_call.1} parent=1 // pred_check_branch
      %167 = sbr.rel (0) target = $region77
    $region76: #{tpu_custom_call.1} parent=1 // pred_region
      %168 = dma.done [#allocation9], 2048
    $region77: #{tpu_custom_call.1} parent=1 // pred_fallthru
      _
    // Predicated region
    $region78: #{tpu_custom_call.1} parent=1 // pred_check
      _
    $region79: #{tpu_custom_call.1} parent=1 // pred_check_branch
      %170 = sbr.rel (0) target = $region81
    $region80: #{tpu_custom_call.1} parent=1 // pred_region
      %171 = dma.done [#allocation9], 2048
    $region81: #{tpu_custom_call.1} parent=1 // pred_fallthru
      _
    // Predicated region
    $region82: #{tpu_custom_call.1} parent=1 // pred_check
      _
    $region83: #{tpu_custom_call.1} parent=1 // pred_check_branch
      %173 = sbr.rel (0) target = $region85
    $region84: #{tpu_custom_call.1} parent=1 // pred_region
      %174 = dma.done [#allocation12], 2048
    $region85: #{tpu_custom_call.1} parent=1 // pred_fallthru
      _
    // Predicated region
    $region86: #{tpu_custom_call.1} parent=1 // pred_check
      _
    $region87: #{tpu_custom_call.1} parent=1 // pred_check_branch
      %176 = sbr.rel (0) target = $region89
    $region88: #{tpu_custom_call.1} parent=1 // pred_region
      %177 = dma.done [#allocation12], 2048
    $region89: #{tpu_custom_call.1} parent=1 // pred_fallthru
      _
    // Predicated region
    $region90: #{tpu_custom_call.1} parent=1 // pred_check
      _
    $region91: #{tpu_custom_call.1} parent=1 // pred_check_branch
      %179 = sbr.rel (0) target = $region93
    $region92: #{tpu_custom_call.1} parent=1 // pred_region
      %180 = dma.done [#allocation15], 2048
    $region93: #{tpu_custom_call.1} parent=1 // pred_fallthru
      _
    // Predicated region
    $region94: #{tpu_custom_call.1} parent=1 // pred_check
      _
    $region95: #{tpu_custom_call.1} parent=1 // pred_check_branch
      %182 = sbr.rel (0) target = $region97
    $region96: #{tpu_custom_call.1} parent=1 // pred_region
      %183 = dma.done [#allocation15], 2048
    $region97: #{tpu_custom_call.1} parent=1 // pred_fallthru
      _
    // Predicated region
    $region98: #{tpu_custom_call.1} parent=1 // pred_check
      _
    $region99: #{tpu_custom_call.1} parent=1 // pred_check_branch
      %185 = sbr.rel (0) target = $region101
    $region100: #{tpu_custom_call.1} parent=1 // pred_region
      %186 = dma.done [#allocation18], 2048
    $region101: #{tpu_custom_call.1} parent=1 // pred_fallthru
      _
    %v187 = vld [vmem:[#allocation2] sm:$0xff]
    %v188 = vld [vmem:[#allocation2 + $0x8] sm:$0xff]
    %v189 = vld [vmem:[#allocation2 + $0x10] sm:$0xff]
    %v190 = vld [vmem:[#allocation2 + $0x18] sm:$0xff]
    %v191 = vld [vmem:[#allocation2 + $0x20] sm:$0xff]
    %v192 = vld [vmem:[#allocation2 + $0x28] sm:$0xff]
    %v193 = vld [vmem:[#allocation2 + $0x30] sm:$0xff]
    %v194 = vld [vmem:[#allocation2 + $0x38] sm:$0xff]
    %v195 = vld [vmem:[#allocation2 + $0x40] sm:$0xff]
    %v196 = vld [vmem:[#allocation2 + $0x48] sm:$0xff]
    %v197 = vld [vmem:[#allocation2 + $0x50] sm:$0xff]
    %v198 = vld [vmem:[#allocation2 + $0x58] sm:$0xff]
    %v199 = vld [vmem:[#allocation2 + $0x60] sm:$0xff]
    %v200 = vld [vmem:[#allocation2 + $0x68] sm:$0xff]
    %v201 = vld [vmem:[#allocation2 + $0x70] sm:$0xff]
    %v202 = vld [vmem:[#allocation2 + $0x78] sm:$0xff]
    %v203 = vld [vmem:[#allocation5] sm:$0xff]
    %v204 = vld [vmem:[#allocation5 + $0x8] sm:$0xff]
    %v205 = vld [vmem:[#allocation5 + $0x10] sm:$0xff]
    %v206 = vld [vmem:[#allocation5 + $0x18] sm:$0xff]
    %v207 = vld [vmem:[#allocation5 + $0x20] sm:$0xff]
    %v208 = vld [vmem:[#allocation5 + $0x28] sm:$0xff]
    %v209 = vld [vmem:[#allocation5 + $0x30] sm:$0xff]
    %v210 = vld [vmem:[#allocation5 + $0x38] sm:$0xff]
    %v211 = vld [vmem:[#allocation5 + $0x40] sm:$0xff]
    %v212 = vld [vmem:[#allocation5 + $0x48] sm:$0xff]
    %v213 = vld [vmem:[#allocation5 + $0x50] sm:$0xff]
    %v214 = vld [vmem:[#allocation5 + $0x58] sm:$0xff]
    %v215 = vld [vmem:[#allocation5 + $0x60] sm:$0xff]
    %v216 = vld [vmem:[#allocation5 + $0x68] sm:$0xff]
    %v217 = vld [vmem:[#allocation5 + $0x70] sm:$0xff]
    %v218 = vld [vmem:[#allocation5 + $0x78] sm:$0xff]
    %v219 = vld [vmem:[#allocation7] sm:$0xff]
    %v220 = vld [vmem:[#allocation7 + $0x8] sm:$0xff]
    %v221 = vld [vmem:[#allocation7 + $0x10] sm:$0xff]
    %v222 = vld [vmem:[#allocation7 + $0x18] sm:$0xff]
    %v223 = vld [vmem:[#allocation7 + $0x20] sm:$0xff]
    %v224 = vld [vmem:[#allocation7 + $0x28] sm:$0xff]
    %v225 = vld [vmem:[#allocation7 + $0x30] sm:$0xff]
    %v226 = vld [vmem:[#allocation7 + $0x38] sm:$0xff]
    %v227 = vld [vmem:[#allocation7 + $0x40] sm:$0xff]
    %v228 = vld [vmem:[#allocation7 + $0x48] sm:$0xff]
    %v229 = vld [vmem:[#allocation7 + $0x50] sm:$0xff]
    %v230 = vld [vmem:[#allocation7 + $0x58] sm:$0xff]
    %v231 = vld [vmem:[#allocation7 + $0x60] sm:$0xff]
    %v232 = vld [vmem:[#allocation7 + $0x68] sm:$0xff]
    %v233 = vld [vmem:[#allocation7 + $0x70] sm:$0xff]
    %v234 = vld [vmem:[#allocation7 + $0x78] sm:$0xff]
    %v235 = vld [vmem:[#allocation8] sm:$0xff]
    %v236 = vld [vmem:[#allocation8 + $0x8] sm:$0xff]
    %v237 = vld [vmem:[#allocation8 + $0x10] sm:$0xff]
    %v238 = vld [vmem:[#allocation8 + $0x18] sm:$0xff]
    %v239 = vld [vmem:[#allocation8 + $0x20] sm:$0xff]
    %v240 = vld [vmem:[#allocation8 + $0x28] sm:$0xff]
    %v241 = vld [vmem:[#allocation8 + $0x30] sm:$0xff]
    %v242 = vld [vmem:[#allocation8 + $0x38] sm:$0xff]
    %v243 = vld [vmem:[#allocation8 + $0x40] sm:$0xff]
    %v244 = vld [vmem:[#allocation8 + $0x48] sm:$0xff]
    %v245 = vld [vmem:[#allocation8 + $0x50] sm:$0xff]
    %v246 = vld [vmem:[#allocation8 + $0x58] sm:$0xff]
    %v247 = vld [vmem:[#allocation8 + $0x60] sm:$0xff]
    %v248 = vld [vmem:[#allocation8 + $0x68] sm:$0xff]
    %v249 = vld [vmem:[#allocation8 + $0x70] sm:$0xff]
    %v250 = vld [vmem:[#allocation8 + $0x78] sm:$0xff]
    %251 = vmatprep.subr.mxu0 0.0
    %252 = vmatpush1.msra.mxu0 %v235
    %253 = vmatprep.subr.mxu0 0.0
    %254 = vmatpush1.msra.mxu0 %v236
    %255 = vmatprep.subr.mxu0 0.0
    %256 = vmatpush1.msra.mxu0 %v237
    %257 = vmatprep.subr.mxu0 0.0
    %258 = vmatpush1.msra.mxu0 %v238
    %259 = vmatprep.subr.mxu0 0.0
    %260 = vmatpush1.msra.mxu0 %v239
    %261 = vmatprep.subr.mxu0 0.0
    %262 = vmatpush1.msra.mxu0 %v240
    %263 = vmatprep.subr.mxu0 0.0
    %264 = vmatpush1.msra.mxu0 %v241
    %265 = vmatprep.subr.mxu0 0.0
    %266 = vmatpush1.msra.mxu0 %v242
    %267 = vmatprep.subr.mxu0 0.0
    %268 = vmatpush1.msra.mxu0 %v243
    %269 = vmatprep.subr.mxu0 0.0
    %270 = vmatpush1.msra.mxu0 %v244
    %271 = vmatprep.subr.mxu0 0.0
    %272 = vmatpush1.msra.mxu0 %v245
    %273 = vmatprep.subr.mxu0 0.0
    %274 = vmatpush1.msra.mxu0 %v246
    %275 = vmatprep.subr.mxu0 0.0
    %276 = vmatpush1.msra.mxu0 %v247
    %277 = vmatprep.subr.mxu0 0.0
    %278 = vmatpush1.msra.mxu0 %v248
    %279 = vmatprep.subr.mxu0 0.0
    %280 = vmatpush1.msra.mxu0 %v249
    %281 = vmatprep.subr.mxu0 0.0
    %282 = vmatpush1.msra.mxu0 %v250
    %283 = vmatprep.subr.mxu0 0.0
    %284 = vmatpush1.msra.mxu0 0.0
    %285 = vmatprep.subr.mxu0 0.0
    %286 = vmatpush1.msra.mxu0 0.0
    %287 = vmatprep.subr.mxu0 0.0
    %288 = vmatpush1.msra.mxu0 0.0
    %289 = vmatprep.subr.mxu0 0.0
    %290 = vmatpush1.msra.mxu0 0.0
    %291 = vmatprep.subr.mxu0 0.0
    %292 = vmatpush1.msra.mxu0 0.0
    %293 = vmatprep.subr.mxu0 0.0
    %294 = vmatpush1.msra.mxu0 0.0
    %295 = vmatprep.subr.mxu0 0.0
    %296 = vmatpush1.msra.mxu0 0.0
    %297 = vmatprep.subr.mxu0 0.0
    %298 = vmatpush1.msra.mxu0 0.0
    %299 = vmatprep.subr.mxu0 0.0
    %300 = vmatpush1.msra.mxu0 0.0
    %301 = vmatprep.subr.mxu0 0.0
    %302 = vmatpush1.msra.mxu0 0.0
    %303 = vmatprep.subr.mxu0 0.0
    %304 = vmatpush1.msra.mxu0 0.0
    %305 = vmatprep.subr.mxu0 0.0
    %306 = vmatpush1.msra.mxu0 0.0
    %307 = vmatprep.subr.mxu0 0.0
    %308 = vmatpush1.msra.mxu0 0.0
    %309 = vmatprep.subr.mxu0 0.0
    %310 = vmatpush1.msra.mxu0 0.0
    %311 = vmatprep.subr.mxu0 0.0
    %312 = vmatpush1.msra.mxu0 0.0
    %313 = vmatprep.subr.mxu0 0.0
    %314 = vmatpush1.msra.mxu0 0.0
    %315 = vmatprep.mubr.f32.mxu0 0.0
    %316 = vmatmul.mubr.f32.gmra.mrb[0].mxu0 %v203
    %v317 = vpop.f32.mrb[0].mxu0
    %v318 = vadd.f32 0.0, %v317
    %v319 = vpop.f32.mrb[0].mxu0
    %320 = vmatprep.mubr.f32.mxu0 0.0
    %321 = vmatmul.mubr.f32.gmra.mrb[0].mxu0 %v204
    %v322 = vpop.f32.mrb[0].mxu0
    %v323 = vadd.f32 0.0, %v322
    %v324 = vpop.f32.mrb[0].mxu0
    %325 = vmatprep.mubr.f32.mxu0 0.0
    %326 = vmatmul.mubr.f32.gmra.mrb[0].mxu0 %v205
    %v327 = vpop.f32.mrb[0].mxu0
    %v328 = vadd.f32 0.0, %v327
    %v329 = vpop.f32.mrb[0].mxu0
    %330 = vmatprep.mubr.f32.mxu0 0.0
    %331 = vmatmul.mubr.f32.gmra.mrb[0].mxu0 %v206
    %v332 = vpop.f32.mrb[0].mxu0
    %v333 = vadd.f32 0.0, %v332
    %v334 = vpop.f32.mrb[0].mxu0
    %335 = vmatprep.mubr.f32.mxu0 0.0
    %336 = vmatmul.mubr.f32.gmra.mrb[0].mxu0 %v207
    %v337 = vpop.f32.mrb[0].mxu0
    %v338 = vadd.f32 0.0, %v337
    %v339 = vpop.f32.mrb[0].mxu0
    %340 = vmatprep.mubr.f32.mxu0 0.0
    %341 = vmatmul.mubr.f32.gmra.mrb[0].mxu0 %v208
    %v342 = vpop.f32.mrb[0].mxu0
    %v343 = vadd.f32 0.0, %v342
    %v344 = vpop.f32.mrb[0].mxu0
    %345 = vmatprep.mubr.f32.mxu0 0.0
    %346 = vmatmul.mubr.f32.gmra.mrb[0].mxu0 %v209
    %v347 = vpop.f32.mrb[0].mxu0
    %v348 = vadd.f32 0.0, %v347
    %v349 = vpop.f32.mrb[0].mxu0
    %350 = vmatprep.mubr.f32.mxu0 0.0
    %351 = vmatmul.mubr.f32.gmra.mrb[0].mxu0 %v210
    %v352 = vpop.f32.mrb[0].mxu0
    %v353 = vadd.f32 0.0, %v352
    %v354 = vpop.f32.mrb[0].mxu0
    %355 = vmatprep.mubr.f32.mxu0 0.0
    %356 = vmatmul.mubr.f32.gmra.mrb[0].mxu0 %v211
    %v357 = vpop.f32.mrb[0].mxu0
    %v358 = vadd.f32 0.0, %v357
    %v359 = vpop.f32.mrb[0].mxu0
    %360 = vmatprep.mubr.f32.mxu0 0.0
    %361 = vmatmul.mubr.f32.gmra.mrb[0].mxu0 %v212
    %v362 = vpop.f32.mrb[0].mxu0
    %v363 = vadd.f32 0.0, %v362
    %v364 = vpop.f32.mrb[0].mxu0
    %365 = vmatprep.mubr.f32.mxu0 0.0
    %366 = vmatmul.mubr.f32.gmra.mrb[0].mxu0 %v213
    %v367 = vpop.f32.mrb[0].mxu0
    %v368 = vadd.f32 0.0, %v367
    %v369 = vpop.f32.mrb[0].mxu0
    %370 = vmatprep.mubr.f32.mxu0 0.0
    %371 = vmatmul.mubr.f32.gmra.mrb[0].mxu0 %v214
    %v372 = vpop.f32.mrb[0].mxu0
    %v373 = vadd.f32 0.0, %v372
    %v374 = vpop.f32.mrb[0].mxu0
    %375 = vmatprep.mubr.f32.mxu0 0.0
    %376 = vmatmul.mubr.f32.gmra.mrb[0].mxu0 %v215
    %v377 = vpop.f32.mrb[0].mxu0
    %v378 = vadd.f32 0.0, %v377
    %v379 = vpop.f32.mrb[0].mxu0
    %380 = vmatprep.mubr.f32.mxu0 0.0
    %381 = vmatmul.mubr.f32.gmra.mrb[0].mxu0 %v216
    %v382 = vpop.f32.mrb[0].mxu0
    %v383 = vadd.f32 0.0, %v382
    %v384 = vpop.f32.mrb[0].mxu0
    %385 = vmatprep.mubr.f32.mxu0 0.0
    %386 = vmatmul.mubr.f32.gmra.mrb[0].mxu0 %v217
    %v387 = vpop.f32.mrb[0].mxu0
    %v388 = vadd.f32 0.0, %v387
    %v389 = vpop.f32.mrb[0].mxu0
    %390 = vmatprep.mubr.f32.mxu0 0.0
    %391 = vmatmul.mubr.f32.gmra.mrb[0].mxu0 %v218
    %v392 = vpop.f32.mrb[0].mxu0
    %v393 = vadd.f32 0.0, %v392
    %v394 = vpop.f32.mrb[0].mxu0
    %395 = vdwg.mxu0
    %396 = vmatprep.subr.mxu0 0.0
    %397 = vmatpush1.msra.mxu0 %v219
    %398 = vmatprep.subr.mxu0 0.0
    %399 = vmatpush1.msra.mxu0 %v220
    %400 = vmatprep.subr.mxu0 0.0
    %401 = vmatpush1.msra.mxu0 %v221
    %402 = vmatprep.subr.mxu0 0.0
    %403 = vmatpush1.msra.mxu0 %v222
    %404 = vmatprep.subr.mxu0 0.0
    %405 = vmatpush1.msra.mxu0 %v223
    %406 = vmatprep.subr.mxu0 0.0
    %407 = vmatpush1.msra.mxu0 %v224
    %408 = vmatprep.subr.mxu0 0.0
    %409 = vmatpush1.msra.mxu0 %v225
    %410 = vmatprep.subr.mxu0 0.0
    %411 = vmatpush1.msra.mxu0 %v226
    %412 = vmatprep.subr.mxu0 0.0
    %413 = vmatpush1.msra.mxu0 %v227
    %414 = vmatprep.subr.mxu0 0.0
    %415 = vmatpush1.msra.mxu0 %v228
    %416 = vmatprep.subr.mxu0 0.0
    %417 = vmatpush1.msra.mxu0 %v229
    %418 = vmatprep.subr.mxu0 0.0
    %419 = vmatpush1.msra.mxu0 %v230
    %420 = vmatprep.subr.mxu0 0.0
    %421 = vmatpush1.msra.mxu0 %v231
    %422 = vmatprep.subr.mxu0 0.0
    %423 = vmatpush1.msra.mxu0 %v232
    %424 = vmatprep.subr.mxu0 0.0
    %425 = vmatpush1.msra.mxu0 %v233
    %426 = vmatprep.subr.mxu0 0.0
    %427 = vmatpush1.msra.mxu0 %v234
    %428 = vmatprep.subr.mxu0 0.0
    %429 = vmatpush1.msra.mxu0 0.0
    %430 = vmatprep.subr.mxu0 0.0
    %431 = vmatpush1.msra.mxu0 0.0
    %432 = vmatprep.subr.mxu0 0.0
    %433 = vmatpush1.msra.mxu0 0.0
    %434 = vmatprep.subr.mxu0 0.0
    %435 = vmatpush1.msra.mxu0 0.0
    %436 = vmatprep.subr.mxu0 0.0
    %437 = vmatpush1.msra.mxu0 0.0
    %438 = vmatprep.subr.mxu0 0.0
    %439 = vmatpush1.msra.mxu0 0.0
    %440 = vmatprep.subr.mxu0 0.0
    %441 = vmatpush1.msra.mxu0 0.0
    %442 = vmatprep.subr.mxu0 0.0
    %443 = vmatpush1.msra.mxu0 0.0
    %444 = vmatprep.subr.mxu0 0.0
    %445 = vmatpush1.msra.mxu0 0.0
    %446 = vmatprep.subr.mxu0 0.0
    %447 = vmatpush1.msra.mxu0 0.0
    %448 = vmatprep.subr.mxu0 0.0
    %449 = vmatpush1.msra.mxu0 0.0
    %450 = vmatprep.subr.mxu0 0.0
    %451 = vmatpush1.msra.mxu0 0.0
    %452 = vmatprep.subr.mxu0 0.0
    %453 = vmatpush1.msra.mxu0 0.0
    %454 = vmatprep.subr.mxu0 0.0
    %455 = vmatpush1.msra.mxu0 0.0
    %456 = vmatprep.subr.mxu0 0.0
    %457 = vmatpush1.msra.mxu0 0.0
    %458 = vmatprep.subr.mxu0 0.0
    %459 = vmatpush1.msra.mxu0 0.0
    %460 = vmatprep.mubr.f32.mxu0 0.0
    %461 = vmatmul.mubr.f32.gmra.mrb[0].mxu0 %v187
    %v462 = vpop.f32.mrb[0].mxu0
    %v463 = vadd.f32 %v318, %v462
    %v464 = vpop.f32.mrb[0].mxu0
    %465 = vmatprep.mubr.f32.mxu0 0.0
    %466 = vmatmul.mubr.f32.gmra.mrb[0].mxu0 %v188
    %v467 = vpop.f32.mrb[0].mxu0
    %v468 = vadd.f32 %v323, %v467
    %v469 = vpop.f32.mrb[0].mxu0
    %470 = vmatprep.mubr.f32.mxu0 0.0
    %471 = vmatmul.mubr.f32.gmra.mrb[0].mxu0 %v189
    %v472 = vpop.f32.mrb[0].mxu0
    %v473 = vadd.f32 %v328, %v472
    %v474 = vpop.f32.mrb[0].mxu0
    %475 = vmatprep.mubr.f32.mxu0 0.0
    %476 = vmatmul.mubr.f32.gmra.mrb[0].mxu0 %v190
    %v477 = vpop.f32.mrb[0].mxu0
    %v478 = vadd.f32 %v333, %v477
    %v479 = vpop.f32.mrb[0].mxu0
    %480 = vmatprep.mubr.f32.mxu0 0.0
    %481 = vmatmul.mubr.f32.gmra.mrb[0].mxu0 %v191
    %v482 = vpop.f32.mrb[0].mxu0
    %v483 = vadd.f32 %v338, %v482
    %v484 = vpop.f32.mrb[0].mxu0
    %485 = vmatprep.mubr.f32.mxu0 0.0
    %486 = vmatmul.mubr.f32.gmra.mrb[0].mxu0 %v192
    %v487 = vpop.f32.mrb[0].mxu0
    %v488 = vadd.f32 %v343, %v487
    %v489 = vpop.f32.mrb[0].mxu0
    %490 = vmatprep.mubr.f32.mxu0 0.0
    %491 = vmatmul.mubr.f32.gmra.mrb[0].mxu0 %v193
    %v492 = vpop.f32.mrb[0].mxu0
    %v493 = vadd.f32 %v348, %v492
    %v494 = vpop.f32.mrb[0].mxu0
    %495 = vmatprep.mubr.f32.mxu0 0.0
    %496 = vmatmul.mubr.f32.gmra.mrb[0].mxu0 %v194
    %v497 = vpop.f32.mrb[0].mxu0
    %v498 = vadd.f32 %v353, %v497
    %v499 = vpop.f32.mrb[0].mxu0
    %500 = vmatprep.mubr.f32.mxu0 0.0
    %501 = vmatmul.mubr.f32.gmra.mrb[0].mxu0 %v195
    %v502 = vpop.f32.mrb[0].mxu0
    %v503 = vadd.f32 %v358, %v502
    %v504 = vpop.f32.mrb[0].mxu0
    %505 = vmatprep.mubr.f32.mxu0 0.0
    %506 = vmatmul.mubr.f32.gmra.mrb[0].mxu0 %v196
    %v507 = vpop.f32.mrb[0].mxu0
    %v508 = vadd.f32 %v363, %v507
    %v509 = vpop.f32.mrb[0].mxu0
    %510 = vmatprep.mubr.f32.mxu0 0.0
    %511 = vmatmul.mubr.f32.gmra.mrb[0].mxu0 %v197
    %v512 = vpop.f32.mrb[0].mxu0
    %v513 = vadd.f32 %v368, %v512
    %v514 = vpop.f32.mrb[0].mxu0
    %515 = vmatprep.mubr.f32.mxu0 0.0
    %516 = vmatmul.mubr.f32.gmra.mrb[0].mxu0 %v198
    %v517 = vpop.f32.mrb[0].mxu0
    %v518 = vadd.f32 %v373, %v517
    %v519 = vpop.f32.mrb[0].mxu0
    %520 = vmatprep.mubr.f32.mxu0 0.0
    %521 = vmatmul.mubr.f32.gmra.mrb[0].mxu0 %v199
    %v522 = vpop.f32.mrb[0].mxu0
    %v523 = vadd.f32 %v378, %v522
    %v524 = vpop.f32.mrb[0].mxu0
    %525 = vmatprep.mubr.f32.mxu0 0.0
    %526 = vmatmul.mubr.f32.gmra.mrb[0].mxu0 %v200
    %v527 = vpop.f32.mrb[0].mxu0
    %v528 = vadd.f32 %v383, %v527
    %v529 = vpop.f32.mrb[0].mxu0
    %530 = vmatprep.mubr.f32.mxu0 0.0
    %531 = vmatmul.mubr.f32.gmra.mrb[0].mxu0 %v201
    %v532 = vpop.f32.mrb[0].mxu0
    %v533 = vadd.f32 %v388, %v532
    %v534 = vpop.f32.mrb[0].mxu0
    %535 = vmatprep.mubr.f32.mxu0 0.0
    %536 = vmatmul.mubr.f32.gmra.mrb[0].mxu0 %v202
    %v537 = vpop.f32.mrb[0].mxu0
    %v538 = vadd.f32 %v393, %v537
    %v539 = vpop.f32.mrb[0].mxu0
    %540 = vdwg.mxu0
    %v541 = vld [vmem:[%s4] sm:$0x1]
    %v543 = vlaneseq
    %v544 = vshrl.u32 %v543, 7
    %v545 = vsub.s32 0, %v544
    %v546 = vrot.slane %v541, %v545
    %v548 = vadd.f32 %v463, %v546
    %v549 = vadd.f32 %v468, %v546
    %v550 = vadd.f32 %v473, %v546
    %v551 = vadd.f32 %v478, %v546
    %v552 = vadd.f32 %v483, %v546
    %v553 = vadd.f32 %v488, %v546
    %v554 = vadd.f32 %v493, %v546
    %v555 = vadd.f32 %v498, %v546
    %v556 = vadd.f32 %v503, %v546
    %v557 = vadd.f32 %v508, %v546
    %v558 = vadd.f32 %v513, %v546
    %v559 = vadd.f32 %v518, %v546
    %v560 = vadd.f32 %v523, %v546
    %v561 = vadd.f32 %v528, %v546
    %v562 = vadd.f32 %v533, %v546
    %v563 = vadd.f32 %v538, %v546
    %v564 = vxor.u32 %v548, 2147483648
    %v565 = vxor.u32 %v549, 2147483648
    %v566 = vxor.u32 %v550, 2147483648
    %v567 = vxor.u32 %v551, 2147483648
    %v568 = vxor.u32 %v552, 2147483648
    %v569 = vxor.u32 %v553, 2147483648
    %v570 = vxor.u32 %v554, 2147483648
    %v571 = vxor.u32 %v555, 2147483648
    %v572 = vxor.u32 %v556, 2147483648
    %v573 = vxor.u32 %v557, 2147483648
    %v574 = vxor.u32 %v558, 2147483648
    %v575 = vxor.u32 %v559, 2147483648
    %v576 = vxor.u32 %v560, 2147483648
    %v577 = vxor.u32 %v561, 2147483648
    %v578 = vxor.u32 %v562, 2147483648
    %v579 = vxor.u32 %v563, 2147483648
    %v580 = vmul.f32 %v564, 1.442695
    %v581 = vpow.pop %v580
    %v582 = vmul.f32 %v565, 1.442695
    %v583 = vpow.pop %v582
    %v584 = vmul.f32 %v566, 1.442695
    %v585 = vpow.pop %v584
    %v586 = vmul.f32 %v567, 1.442695
    %v587 = vpow.pop %v586
    %v588 = vmul.f32 %v568, 1.442695
    %v589 = vpow.pop %v588
    %v590 = vmul.f32 %v569, 1.442695
    %v591 = vpow.pop %v590
    %v592 = vmul.f32 %v570, 1.442695
    %v593 = vpow.pop %v592
    %v594 = vmul.f32 %v571, 1.442695
    %v595 = vpow.pop %v594
    %v596 = vmul.f32 %v572, 1.442695
    %v597 = vpow.pop %v596
    %v598 = vmul.f32 %v573, 1.442695
    %v599 = vpow.pop %v598
    %v600 = vmul.f32 %v574, 1.442695
    %v601 = vpow.pop %v600
    %v602 = vmul.f32 %v575, 1.442695
    %v603 = vpow.pop %v602
    %v604 = vmul.f32 %v576, 1.442695
    %v605 = vpow.pop %v604
    %v606 = vmul.f32 %v577, 1.442695
    %v607 = vpow.pop %v606
    %v608 = vmul.f32 %v578, 1.442695
    %v609 = vpow.pop %v608
    %v610 = vmul.f32 %v579, 1.442695
    %v611 = vpow.pop %v610
    %v612 = vadd.f32 %v581, 1.0
    %v613 = vadd.f32 %v583, 1.0
    %v614 = vadd.f32 %v585, 1.0
    %v615 = vadd.f32 %v587, 1.0
    %v616 = vadd.f32 %v589, 1.0
    %v617 = vadd.f32 %v591, 1.0
    %v618 = vadd.f32 %v593, 1.0
    %v619 = vadd.f32 %v595, 1.0
    %v620 = vadd.f32 %v597, 1.0
    %v621 = vadd.f32 %v599, 1.0
    %v622 = vadd.f32 %v601, 1.0
    %v623 = vadd.f32 %v603, 1.0
    %v624 = vadd.f32 %v605, 1.0
    %v625 = vadd.f32 %v607, 1.0
    %v626 = vadd.f32 %v609, 1.0
    %v627 = vadd.f32 %v611, 1.0
    %v628 = vrcp.pop %v612
    %v629 = vmul.f32 1.0, %v628
    %v630 = vrcp.pop %v613
    %v631 = vmul.f32 1.0, %v630
    %v632 = vrcp.pop %v614
    %v633 = vmul.f32 1.0, %v632
    %v634 = vrcp.pop %v615
    %v635 = vmul.f32 1.0, %v634
    %v636 = vrcp.pop %v616
    %v637 = vmul.f32 1.0, %v636
    %v638 = vrcp.pop %v617
    %v639 = vmul.f32 1.0, %v638
    %v640 = vrcp.pop %v618
    %v641 = vmul.f32 1.0, %v640
    %v642 = vrcp.pop %v619
    %v643 = vmul.f32 1.0, %v642
    %v644 = vrcp.pop %v620
    %v645 = vmul.f32 1.0, %v644
    %v646 = vrcp.pop %v621
    %v647 = vmul.f32 1.0, %v646
    %v648 = vrcp.pop %v622
    %v649 = vmul.f32 1.0, %v648
    %v650 = vrcp.pop %v623
    %v651 = vmul.f32 1.0, %v650
    %v652 = vrcp.pop %v624
    %v653 = vmul.f32 1.0, %v652
    %v654 = vrcp.pop %v625
    %v655 = vmul.f32 1.0, %v654
    %v656 = vrcp.pop %v626
    %v657 = vmul.f32 1.0, %v656
    %v658 = vrcp.pop %v627
    %v659 = vmul.f32 1.0, %v658
    %v660 = vmul.f32 %v548, %v629
    %v661 = vmul.f32 %v549, %v631
    %v662 = vmul.f32 %v550, %v633
    %v663 = vmul.f32 %v551, %v635
    %v664 = vmul.f32 %v552, %v637
    %v665 = vmul.f32 %v553, %v639
    %v666 = vmul.f32 %v554, %v641
    %v667 = vmul.f32 %v555, %v643
    %v668 = vmul.f32 %v556, %v645
    %v669 = vmul.f32 %v557, %v647
    %v670 = vmul.f32 %v558, %v649
    %v671 = vmul.f32 %v559, %v651
    %v672 = vmul.f32 %v560, %v653
    %v673 = vmul.f32 %v561, %v655
    %v674 = vmul.f32 %v562, %v657
    %v675 = vmul.f32 %v563, %v659
    %v676 = vld [vmem:[#allocation10] sm:$0xff]
    %v677 = vld [vmem:[#allocation10 + $0x8] sm:$0xff]
    %v678 = vld [vmem:[#allocation10 + $0x10] sm:$0xff]
    %v679 = vld [vmem:[#allocation10 + $0x18] sm:$0xff]
    %v680 = vld [vmem:[#allocation10 + $0x20] sm:$0xff]
    %v681 = vld [vmem:[#allocation10 + $0x28] sm:$0xff]
    %v682 = vld [vmem:[#allocation10 + $0x30] sm:$0xff]
    %v683 = vld [vmem:[#allocation10 + $0x38] sm:$0xff]
    %v684 = vld [vmem:[#allocation10 + $0x40] sm:$0xff]
    %v685 = vld [vmem:[#allocation10 + $0x48] sm:$0xff]
    %v686 = vld [vmem:[#allocation10 + $0x50] sm:$0xff]
    %v687 = vld [vmem:[#allocation10 + $0x58] sm:$0xff]
    %v688 = vld [vmem:[#allocation10 + $0x60] sm:$0xff]
    %v689 = vld [vmem:[#allocation10 + $0x68] sm:$0xff]
    %v690 = vld [vmem:[#allocation10 + $0x70] sm:$0xff]
    %v691 = vld [vmem:[#allocation10 + $0x78] sm:$0xff]
    %v692 = vld [vmem:[%s6] sm:$0x1]
    %v694 = vlaneseq
    %v695 = vshrl.u32 %v694, 7
    %v696 = vsub.s32 0, %v695
    %v697 = vrot.slane %v692, %v696
    %699 = vmatprep.subr.mxu0 0.0
    %700 = vmatpush1.msra.mxu0 %v676
    %701 = vmatprep.subr.mxu0 0.0
    %702 = vmatpush1.msra.mxu0 %v677
    %703 = vmatprep.subr.mxu0 0.0
    %704 = vmatpush1.msra.mxu0 %v678
    %705 = vmatprep.subr.mxu0 0.0
    %706 = vmatpush1.msra.mxu0 %v679
    %707 = vmatprep.subr.mxu0 0.0
    %708 = vmatpush1.msra.mxu0 %v680
    %709 = vmatprep.subr.mxu0 0.0
    %710 = vmatpush1.msra.mxu0 %v681
    %711 = vmatprep.subr.mxu0 0.0
    %712 = vmatpush1.msra.mxu0 %v682
    %713 = vmatprep.subr.mxu0 0.0
    %714 = vmatpush1.msra.mxu0 %v683
    %715 = vmatprep.subr.mxu0 0.0
    %716 = vmatpush1.msra.mxu0 %v684
    %717 = vmatprep.subr.mxu0 0.0
    %718 = vmatpush1.msra.mxu0 %v685
    %719 = vmatprep.subr.mxu0 0.0
    %720 = vmatpush1.msra.mxu0 %v686
    %721 = vmatprep.subr.mxu0 0.0
    %722 = vmatpush1.msra.mxu0 %v687
    %723 = vmatprep.subr.mxu0 0.0
    %724 = vmatpush1.msra.mxu0 %v688
    %725 = vmatprep.subr.mxu0 0.0
    %726 = vmatpush1.msra.mxu0 %v689
    %727 = vmatprep.subr.mxu0 0.0
    %728 = vmatpush1.msra.mxu0 %v690
    %729 = vmatprep.subr.mxu0 0.0
    %730 = vmatpush1.msra.mxu0 %v691
    %731 = vmatprep.subr.mxu0 0.0
    %732 = vmatpush1.msra.mxu0 0.0
    %733 = vmatprep.subr.mxu0 0.0
    %734 = vmatpush1.msra.mxu0 0.0
    %735 = vmatprep.subr.mxu0 0.0
    %736 = vmatpush1.msra.mxu0 0.0
    %737 = vmatprep.subr.mxu0 0.0
    %738 = vmatpush1.msra.mxu0 0.0
    %739 = vmatprep.subr.mxu0 0.0
    %740 = vmatpush1.msra.mxu0 0.0
    %741 = vmatprep.subr.mxu0 0.0
    %742 = vmatpush1.msra.mxu0 0.0
    %743 = vmatprep.subr.mxu0 0.0
    %744 = vmatpush1.msra.mxu0 0.0
    %745 = vmatprep.subr.mxu0 0.0
    %746 = vmatpush1.msra.mxu0 0.0
    %747 = vmatprep.subr.mxu0 0.0
    %748 = vmatpush1.msra.mxu0 0.0
    %749 = vmatprep.subr.mxu0 0.0
    %750 = vmatpush1.msra.mxu0 0.0
    %751 = vmatprep.subr.mxu0 0.0
    %752 = vmatpush1.msra.mxu0 0.0
    %753 = vmatprep.subr.mxu0 0.0
    %754 = vmatpush1.msra.mxu0 0.0
    %755 = vmatprep.subr.mxu0 0.0
    %756 = vmatpush1.msra.mxu0 0.0
    %757 = vmatprep.subr.mxu0 0.0
    %758 = vmatpush1.msra.mxu0 0.0
    %759 = vmatprep.subr.mxu0 0.0
    %760 = vmatpush1.msra.mxu0 0.0
    %761 = vmatprep.subr.mxu0 0.0
    %762 = vmatpush1.msra.mxu0 0.0
    %763 = vmatprep.mubr.f32.mxu0 0.0
    %764 = vmatmul.mubr.f32.gmra.mrb[0].mxu0 %v660
    %v765 = vpop.f32.mrb[0].mxu0
    %v766 = vadd.f32 %v697, %v765
    %v767 = vpop.f32.mrb[0].mxu0
    %768 = vmatprep.mubr.f32.mxu0 0.0
    %769 = vmatmul.mubr.f32.gmra.mrb[0].mxu0 %v661
    %v770 = vpop.f32.mrb[0].mxu0
    %v771 = vadd.f32 %v697, %v770
    %v772 = vpop.f32.mrb[0].mxu0
    %773 = vmatprep.mubr.f32.mxu0 0.0
    %774 = vmatmul.mubr.f32.gmra.mrb[0].mxu0 %v662
    %v775 = vpop.f32.mrb[0].mxu0
    %v776 = vadd.f32 %v697, %v775
    %v777 = vpop.f32.mrb[0].mxu0
    %778 = vmatprep.mubr.f32.mxu0 0.0
    %779 = vmatmul.mubr.f32.gmra.mrb[0].mxu0 %v663
    %v780 = vpop.f32.mrb[0].mxu0
    %v781 = vadd.f32 %v697, %v780
    %v782 = vpop.f32.mrb[0].mxu0
    %783 = vmatprep.mubr.f32.mxu0 0.0
    %784 = vmatmul.mubr.f32.gmra.mrb[0].mxu0 %v664
    %v785 = vpop.f32.mrb[0].mxu0
    %v786 = vadd.f32 %v697, %v785
    %v787 = vpop.f32.mrb[0].mxu0
    %788 = vmatprep.mubr.f32.mxu0 0.0
    %789 = vmatmul.mubr.f32.gmra.mrb[0].mxu0 %v665
    %v790 = vpop.f32.mrb[0].mxu0
    %v791 = vadd.f32 %v697, %v790
    %v792 = vpop.f32.mrb[0].mxu0
    %793 = vmatprep.mubr.f32.mxu0 0.0
    %794 = vmatmul.mubr.f32.gmra.mrb[0].mxu0 %v666
    %v795 = vpop.f32.mrb[0].mxu0
    %v796 = vadd.f32 %v697, %v795
    %v797 = vpop.f32.mrb[0].mxu0
    %798 = vmatprep.mubr.f32.mxu0 0.0
    %799 = vmatmul.mubr.f32.gmra.mrb[0].mxu0 %v667
    %v800 = vpop.f32.mrb[0].mxu0
    %v801 = vadd.f32 %v697, %v800
    %v802 = vpop.f32.mrb[0].mxu0
    %803 = vmatprep.mubr.f32.mxu0 0.0
    %804 = vmatmul.mubr.f32.gmra.mrb[0].mxu0 %v668
    %v805 = vpop.f32.mrb[0].mxu0
    %v806 = vadd.f32 %v697, %v805
    %v807 = vpop.f32.mrb[0].mxu0
    %808 = vmatprep.mubr.f32.mxu0 0.0
    %809 = vmatmul.mubr.f32.gmra.mrb[0].mxu0 %v669
    %v810 = vpop.f32.mrb[0].mxu0
    %v811 = vadd.f32 %v697, %v810
    %v812 = vpop.f32.mrb[0].mxu0
    %813 = vmatprep.mubr.f32.mxu0 0.0
    %814 = vmatmul.mubr.f32.gmra.mrb[0].mxu0 %v670
    %v815 = vpop.f32.mrb[0].mxu0
    %v816 = vadd.f32 %v697, %v815
    %v817 = vpop.f32.mrb[0].mxu0
    %818 = vmatprep.mubr.f32.mxu0 0.0
    %819 = vmatmul.mubr.f32.gmra.mrb[0].mxu0 %v671
    %v820 = vpop.f32.mrb[0].mxu0
    %v821 = vadd.f32 %v697, %v820
    %v822 = vpop.f32.mrb[0].mxu0
    %823 = vmatprep.mubr.f32.mxu0 0.0
    %824 = vmatmul.mubr.f32.gmra.mrb[0].mxu0 %v672
    %v825 = vpop.f32.mrb[0].mxu0
    %v826 = vadd.f32 %v697, %v825
    %v827 = vpop.f32.mrb[0].mxu0
    %828 = vmatprep.mubr.f32.mxu0 0.0
    %829 = vmatmul.mubr.f32.gmra.mrb[0].mxu0 %v673
    %v830 = vpop.f32.mrb[0].mxu0
    %v831 = vadd.f32 %v697, %v830
    %v832 = vpop.f32.mrb[0].mxu0
    %833 = vmatprep.mubr.f32.mxu0 0.0
    %834 = vmatmul.mubr.f32.gmra.mrb[0].mxu0 %v674
    %v835 = vpop.f32.mrb[0].mxu0
    %v836 = vadd.f32 %v697, %v835
    %v837 = vpop.f32.mrb[0].mxu0
    %838 = vmatprep.mubr.f32.mxu0 0.0
    %839 = vmatmul.mubr.f32.gmra.mrb[0].mxu0 %v675
    %v840 = vpop.f32.mrb[0].mxu0
    %v841 = vadd.f32 %v697, %v840
    %v842 = vpop.f32.mrb[0].mxu0
    %843 = vdwg.mxu0
    %v844 = vxor.u32 %v766, 2147483648
    %v845 = vxor.u32 %v771, 2147483648
    %v846 = vxor.u32 %v776, 2147483648
    %v847 = vxor.u32 %v781, 2147483648
    %v848 = vxor.u32 %v786, 2147483648
    %v849 = vxor.u32 %v791, 2147483648
    %v850 = vxor.u32 %v796, 2147483648
    %v851 = vxor.u32 %v801, 2147483648
    %v852 = vxor.u32 %v806, 2147483648
    %v853 = vxor.u32 %v811, 2147483648
    %v854 = vxor.u32 %v816, 2147483648
    %v855 = vxor.u32 %v821, 2147483648
    %v856 = vxor.u32 %v826, 2147483648
    %v857 = vxor.u32 %v831, 2147483648
    %v858 = vxor.u32 %v836, 2147483648
    %v859 = vxor.u32 %v841, 2147483648
    %v860 = vmul.f32 %v844, 1.442695
    %v861 = vpow.pop %v860
    %v862 = vmul.f32 %v845, 1.442695
    %v863 = vpow.pop %v862
    %v864 = vmul.f32 %v846, 1.442695
    %v865 = vpow.pop %v864
    %v866 = vmul.f32 %v847, 1.442695
    %v867 = vpow.pop %v866
    %v868 = vmul.f32 %v848, 1.442695
    %v869 = vpow.pop %v868
    %v870 = vmul.f32 %v849, 1.442695
    %v871 = vpow.pop %v870
    %v872 = vmul.f32 %v850, 1.442695
    %v873 = vpow.pop %v872
    %v874 = vmul.f32 %v851, 1.442695
    %v875 = vpow.pop %v874
    %v876 = vmul.f32 %v852, 1.442695
    %v877 = vpow.pop %v876
    %v878 = vmul.f32 %v853, 1.442695
    %v879 = vpow.pop %v878
    %v880 = vmul.f32 %v854, 1.442695
    %v881 = vpow.pop %v880
    %v882 = vmul.f32 %v855, 1.442695
    %v883 = vpow.pop %v882
    %v884 = vmul.f32 %v856, 1.442695
    %v885 = vpow.pop %v884
    %v886 = vmul.f32 %v857, 1.442695
    %v887 = vpow.pop %v886
    %v888 = vmul.f32 %v858, 1.442695
    %v889 = vpow.pop %v888
    %v890 = vmul.f32 %v859, 1.442695
    %v891 = vpow.pop %v890
    %v892 = vadd.f32 %v861, 1.0
    %v893 = vadd.f32 %v863, 1.0
    %v894 = vadd.f32 %v865, 1.0
    %v895 = vadd.f32 %v867, 1.0
    %v896 = vadd.f32 %v869, 1.0
    %v897 = vadd.f32 %v871, 1.0
    %v898 = vadd.f32 %v873, 1.0
    %v899 = vadd.f32 %v875, 1.0
    %v900 = vadd.f32 %v877, 1.0
    %v901 = vadd.f32 %v879, 1.0
    %v902 = vadd.f32 %v881, 1.0
    %v903 = vadd.f32 %v883, 1.0
    %v904 = vadd.f32 %v885, 1.0
    %v905 = vadd.f32 %v887, 1.0
    %v906 = vadd.f32 %v889, 1.0
    %v907 = vadd.f32 %v891, 1.0
    %v908 = vrcp.pop %v892
    %v909 = vmul.f32 1.0, %v908
    %v910 = vrcp.pop %v893
    %v911 = vmul.f32 1.0, %v910
    %v912 = vrcp.pop %v894
    %v913 = vmul.f32 1.0, %v912
    %v914 = vrcp.pop %v895
    %v915 = vmul.f32 1.0, %v914
    %v916 = vrcp.pop %v896
    %v917 = vmul.f32 1.0, %v916
    %v918 = vrcp.pop %v897
    %v919 = vmul.f32 1.0, %v918
    %v920 = vrcp.pop %v898
    %v921 = vmul.f32 1.0, %v920
    %v922 = vrcp.pop %v899
    %v923 = vmul.f32 1.0, %v922
    %v924 = vrcp.pop %v900
    %v925 = vmul.f32 1.0, %v924
    %v926 = vrcp.pop %v901
    %v927 = vmul.f32 1.0, %v926
    %v928 = vrcp.pop %v902
    %v929 = vmul.f32 1.0, %v928
    %v930 = vrcp.pop %v903
    %v931 = vmul.f32 1.0, %v930
    %v932 = vrcp.pop %v904
    %v933 = vmul.f32 1.0, %v932
    %v934 = vrcp.pop %v905
    %v935 = vmul.f32 1.0, %v934
    %v936 = vrcp.pop %v906
    %v937 = vmul.f32 1.0, %v936
    %v938 = vrcp.pop %v907
    %v939 = vmul.f32 1.0, %v938
    %v940 = vmul.f32 %v766, %v909
    %v941 = vmul.f32 %v771, %v911
    %v942 = vmul.f32 %v776, %v913
    %v943 = vmul.f32 %v781, %v915
    %v944 = vmul.f32 %v786, %v917
    %v945 = vmul.f32 %v791, %v919
    %v946 = vmul.f32 %v796, %v921
    %v947 = vmul.f32 %v801, %v923
    %v948 = vmul.f32 %v806, %v925
    %v949 = vmul.f32 %v811, %v927
    %v950 = vmul.f32 %v816, %v929
    %v951 = vmul.f32 %v821, %v931
    %v952 = vmul.f32 %v826, %v933
    %v953 = vmul.f32 %v831, %v935
    %v954 = vmul.f32 %v836, %v937
    %v955 = vmul.f32 %v841, %v939
    %v956 = vld [vmem:[#allocation11] sm:$0xff]
    %v957 = vld [vmem:[#allocation11 + $0x8] sm:$0xff]
    %v958 = vld [vmem:[#allocation11 + $0x10] sm:$0xff]
    %v959 = vld [vmem:[#allocation11 + $0x18] sm:$0xff]
    %v960 = vld [vmem:[#allocation11 + $0x20] sm:$0xff]
    %v961 = vld [vmem:[#allocation11 + $0x28] sm:$0xff]
    %v962 = vld [vmem:[#allocation11 + $0x30] sm:$0xff]
    %v963 = vld [vmem:[#allocation11 + $0x38] sm:$0xff]
    %v964 = vld [vmem:[#allocation11 + $0x40] sm:$0xff]
    %v965 = vld [vmem:[#allocation11 + $0x48] sm:$0xff]
    %v966 = vld [vmem:[#allocation11 + $0x50] sm:$0xff]
    %v967 = vld [vmem:[#allocation11 + $0x58] sm:$0xff]
    %v968 = vld [vmem:[#allocation11 + $0x60] sm:$0xff]
    %v969 = vld [vmem:[#allocation11 + $0x68] sm:$0xff]
    %v970 = vld [vmem:[#allocation11 + $0x70] sm:$0xff]
    %v971 = vld [vmem:[#allocation11 + $0x78] sm:$0xff]
    %v972 = vld [vmem:[#allocation13] sm:$0xff]
    %v973 = vld [vmem:[#allocation13 + $0x8] sm:$0xff]
    %v974 = vld [vmem:[#allocation13 + $0x10] sm:$0xff]
    %v975 = vld [vmem:[#allocation13 + $0x18] sm:$0xff]
    %v976 = vld [vmem:[#allocation13 + $0x20] sm:$0xff]
    %v977 = vld [vmem:[#allocation13 + $0x28] sm:$0xff]
    %v978 = vld [vmem:[#allocation13 + $0x30] sm:$0xff]
    %v979 = vld [vmem:[#allocation13 + $0x38] sm:$0xff]
    %v980 = vld [vmem:[#allocation13 + $0x40] sm:$0xff]
    %v981 = vld [vmem:[#allocation13 + $0x48] sm:$0xff]
    %v982 = vld [vmem:[#allocation13 + $0x50] sm:$0xff]
    %v983 = vld [vmem:[#allocation13 + $0x58] sm:$0xff]
    %v984 = vld [vmem:[#allocation13 + $0x60] sm:$0xff]
    %v985 = vld [vmem:[#allocation13 + $0x68] sm:$0xff]
    %v986 = vld [vmem:[#allocation13 + $0x70] sm:$0xff]
    %v987 = vld [vmem:[#allocation13 + $0x78] sm:$0xff]
    %988 = vmatprep.subr.mxu0 0.0
    %989 = vmatpush1.msra.mxu0 %v972
    %990 = vmatprep.subr.mxu0 0.0
    %991 = vmatpush1.msra.mxu0 %v973
    %992 = vmatprep.subr.mxu0 0.0
    %993 = vmatpush1.msra.mxu0 %v974
    %994 = vmatprep.subr.mxu0 0.0
    %995 = vmatpush1.msra.mxu0 %v975
    %996 = vmatprep.subr.mxu0 0.0
    %997 = vmatpush1.msra.mxu0 %v976
    %998 = vmatprep.subr.mxu0 0.0
    %999 = vmatpush1.msra.mxu0 %v977
    %1000 = vmatprep.subr.mxu0 0.0
    %1001 = vmatpush1.msra.mxu0 %v978
    %1002 = vmatprep.subr.mxu0 0.0
    %1003 = vmatpush1.msra.mxu0 %v979
    %1004 = vmatprep.subr.mxu0 0.0
    %1005 = vmatpush1.msra.mxu0 %v980
    %1006 = vmatprep.subr.mxu0 0.0
    %1007 = vmatpush1.msra.mxu0 %v981
    %1008 = vmatprep.subr.mxu0 0.0
    %1009 = vmatpush1.msra.mxu0 %v982
    %1010 = vmatprep.subr.mxu0 0.0
    %1011 = vmatpush1.msra.mxu0 %v983
    %1012 = vmatprep.subr.mxu0 0.0
    %1013 = vmatpush1.msra.mxu0 %v984
    %1014 = vmatprep.subr.mxu0 0.0
    %1015 = vmatpush1.msra.mxu0 %v985
    %1016 = vmatprep.subr.mxu0 0.0
    %1017 = vmatpush1.msra.mxu0 %v986
    %1018 = vmatprep.subr.mxu0 0.0
    %1019 = vmatpush1.msra.mxu0 %v987
    %1020 = vmatprep.subr.mxu0 0.0
    %1021 = vmatpush1.msra.mxu0 0.0
    %1022 = vmatprep.subr.mxu0 0.0
    %1023 = vmatpush1.msra.mxu0 0.0
    %1024 = vmatprep.subr.mxu0 0.0
    %1025 = vmatpush1.msra.mxu0 0.0
    %1026 = vmatprep.subr.mxu0 0.0
    %1027 = vmatpush1.msra.mxu0 0.0
    %1028 = vmatprep.subr.mxu0 0.0
    %1029 = vmatpush1.msra.mxu0 0.0
    %1030 = vmatprep.subr.mxu0 0.0
    %1031 = vmatpush1.msra.mxu0 0.0
    %1032 = vmatprep.subr.mxu0 0.0
    %1033 = vmatpush1.msra.mxu0 0.0
    %1034 = vmatprep.subr.mxu0 0.0
    %1035 = vmatpush1.msra.mxu0 0.0
    %1036 = vmatprep.subr.mxu0 0.0
    %1037 = vmatpush1.msra.mxu0 0.0
    %1038 = vmatprep.subr.mxu0 0.0
    %1039 = vmatpush1.msra.mxu0 0.0
    %1040 = vmatprep.subr.mxu0 0.0
    %1041 = vmatpush1.msra.mxu0 0.0
    %1042 = vmatprep.subr.mxu0 0.0
    %1043 = vmatpush1.msra.mxu0 0.0
    %1044 = vmatprep.subr.mxu0 0.0
    %1045 = vmatpush1.msra.mxu0 0.0
    %1046 = vmatprep.subr.mxu0 0.0
    %1047 = vmatpush1.msra.mxu0 0.0
    %1048 = vmatprep.subr.mxu0 0.0
    %1049 = vmatpush1.msra.mxu0 0.0
    %1050 = vmatprep.subr.mxu0 0.0
    %1051 = vmatpush1.msra.mxu0 0.0
    %1052 = vmatprep.mubr.f32.mxu0 0.0
    %1053 = vmatmul.mubr.f32.gmra.mrb[0].mxu0 %v203
    %v1054 = vpop.f32.mrb[0].mxu0
    %v1055 = vadd.f32 0.0, %v1054
    %v1056 = vpop.f32.mrb[0].mxu0
    %1057 = vmatprep.mubr.f32.mxu0 0.0
    %1058 = vmatmul.mubr.f32.gmra.mrb[0].mxu0 %v204
    %v1059 = vpop.f32.mrb[0].mxu0
    %v1060 = vadd.f32 0.0, %v1059
    %v1061 = vpop.f32.mrb[0].mxu0
    %1062 = vmatprep.mubr.f32.mxu0 0.0
    %1063 = vmatmul.mubr.f32.gmra.mrb[0].mxu0 %v205
    %v1064 = vpop.f32.mrb[0].mxu0
    %v1065 = vadd.f32 0.0, %v1064
    %v1066 = vpop.f32.mrb[0].mxu0
    %1067 = vmatprep.mubr.f32.mxu0 0.0
    %1068 = vmatmul.mubr.f32.gmra.mrb[0].mxu0 %v206
    %v1069 = vpop.f32.mrb[0].mxu0
    %v1070 = vadd.f32 0.0, %v1069
    %v1071 = vpop.f32.mrb[0].mxu0
    %1072 = vmatprep.mubr.f32.mxu0 0.0
    %1073 = vmatmul.mubr.f32.gmra.mrb[0].mxu0 %v207
    %v1074 = vpop.f32.mrb[0].mxu0
    %v1075 = vadd.f32 0.0, %v1074
    %v1076 = vpop.f32.mrb[0].mxu0
    %1077 = vmatprep.mubr.f32.mxu0 0.0
    %1078 = vmatmul.mubr.f32.gmra.mrb[0].mxu0 %v208
    %v1079 = vpop.f32.mrb[0].mxu0
    %v1080 = vadd.f32 0.0, %v1079
    %v1081 = vpop.f32.mrb[0].mxu0
    %1082 = vmatprep.mubr.f32.mxu0 0.0
    %1083 = vmatmul.mubr.f32.gmra.mrb[0].mxu0 %v209
    %v1084 = vpop.f32.mrb[0].mxu0
    %v1085 = vadd.f32 0.0, %v1084
    %v1086 = vpop.f32.mrb[0].mxu0
    %1087 = vmatprep.mubr.f32.mxu0 0.0
    %1088 = vmatmul.mubr.f32.gmra.mrb[0].mxu0 %v210
    %v1089 = vpop.f32.mrb[0].mxu0
    %v1090 = vadd.f32 0.0, %v1089
    %v1091 = vpop.f32.mrb[0].mxu0
    %1092 = vmatprep.mubr.f32.mxu0 0.0
    %1093 = vmatmul.mubr.f32.gmra.mrb[0].mxu0 %v211
    %v1094 = vpop.f32.mrb[0].mxu0
    %v1095 = vadd.f32 0.0, %v1094
    %v1096 = vpop.f32.mrb[0].mxu0
    %1097 = vmatprep.mubr.f32.mxu0 0.0
    %1098 = vmatmul.mubr.f32.gmra.mrb[0].mxu0 %v212
    %v1099 = vpop.f32.mrb[0].mxu0
    %v1100 = vadd.f32 0.0, %v1099
    %v1101 = vpop.f32.mrb[0].mxu0
    %1102 = vmatprep.mubr.f32.mxu0 0.0
    %1103 = vmatmul.mubr.f32.gmra.mrb[0].mxu0 %v213
    %v1104 = vpop.f32.mrb[0].mxu0
    %v1105 = vadd.f32 0.0, %v1104
    %v1106 = vpop.f32.mrb[0].mxu0
    %1107 = vmatprep.mubr.f32.mxu0 0.0
    %1108 = vmatmul.mubr.f32.gmra.mrb[0].mxu0 %v214
    %v1109 = vpop.f32.mrb[0].mxu0
    %v1110 = vadd.f32 0.0, %v1109
    %v1111 = vpop.f32.mrb[0].mxu0
    %1112 = vmatprep.mubr.f32.mxu0 0.0
    %1113 = vmatmul.mubr.f32.gmra.mrb[0].mxu0 %v215
    %v1114 = vpop.f32.mrb[0].mxu0
    %v1115 = vadd.f32 0.0, %v1114
    %v1116 = vpop.f32.mrb[0].mxu0
    %1117 = vmatprep.mubr.f32.mxu0 0.0
    %1118 = vmatmul.mubr.f32.gmra.mrb[0].mxu0 %v216
    %v1119 = vpop.f32.mrb[0].mxu0
    %v1120 = vadd.f32 0.0, %v1119
    %v1121 = vpop.f32.mrb[0].mxu0
    %1122 = vmatprep.mubr.f32.mxu0 0.0
    %1123 = vmatmul.mubr.f32.gmra.mrb[0].mxu0 %v217
    %v1124 = vpop.f32.mrb[0].mxu0
    %v1125 = vadd.f32 0.0, %v1124
    %v1126 = vpop.f32.mrb[0].mxu0
    %1127 = vmatprep.mubr.f32.mxu0 0.0
    %1128 = vmatmul.mubr.f32.gmra.mrb[0].mxu0 %v218
    %v1129 = vpop.f32.mrb[0].mxu0
    %v1130 = vadd.f32 0.0, %v1129
    %v1131 = vpop.f32.mrb[0].mxu0
    %1132 = vdwg.mxu0
    %1133 = vmatprep.subr.mxu0 0.0
    %1134 = vmatpush1.msra.mxu0 %v956
    %1135 = vmatprep.subr.mxu0 0.0
    %1136 = vmatpush1.msra.mxu0 %v957
    %1137 = vmatprep.subr.mxu0 0.0
    %1138 = vmatpush1.msra.mxu0 %v958
    %1139 = vmatprep.subr.mxu0 0.0
    %1140 = vmatpush1.msra.mxu0 %v959
    %1141 = vmatprep.subr.mxu0 0.0
    %1142 = vmatpush1.msra.mxu0 %v960
    %1143 = vmatprep.subr.mxu0 0.0
    %1144 = vmatpush1.msra.mxu0 %v961
    %1145 = vmatprep.subr.mxu0 0.0
    %1146 = vmatpush1.msra.mxu0 %v962
    %1147 = vmatprep.subr.mxu0 0.0
    %1148 = vmatpush1.msra.mxu0 %v963
    %1149 = vmatprep.subr.mxu0 0.0
    %1150 = vmatpush1.msra.mxu0 %v964
    %1151 = vmatprep.subr.mxu0 0.0
    %1152 = vmatpush1.msra.mxu0 %v965
    %1153 = vmatprep.subr.mxu0 0.0
    %1154 = vmatpush1.msra.mxu0 %v966
    %1155 = vmatprep.subr.mxu0 0.0
    %1156 = vmatpush1.msra.mxu0 %v967
    %1157 = vmatprep.subr.mxu0 0.0
    %1158 = vmatpush1.msra.mxu0 %v968
    %1159 = vmatprep.subr.mxu0 0.0
    %1160 = vmatpush1.msra.mxu0 %v969
    %1161 = vmatprep.subr.mxu0 0.0
    %1162 = vmatpush1.msra.mxu0 %v970
    %1163 = vmatprep.subr.mxu0 0.0
    %1164 = vmatpush1.msra.mxu0 %v971
    %1165 = vmatprep.subr.mxu0 0.0
    %1166 = vmatpush1.msra.mxu0 0.0
    %1167 = vmatprep.subr.mxu0 0.0
    %1168 = vmatpush1.msra.mxu0 0.0
    %1169 = vmatprep.subr.mxu0 0.0
    %1170 = vmatpush1.msra.mxu0 0.0
    %1171 = vmatprep.subr.mxu0 0.0
    %1172 = vmatpush1.msra.mxu0 0.0
    %1173 = vmatprep.subr.mxu0 0.0
    %1174 = vmatpush1.msra.mxu0 0.0
    %1175 = vmatprep.subr.mxu0 0.0
    %1176 = vmatpush1.msra.mxu0 0.0
    %1177 = vmatprep.subr.mxu0 0.0
    %1178 = vmatpush1.msra.mxu0 0.0
    %1179 = vmatprep.subr.mxu0 0.0
    %1180 = vmatpush1.msra.mxu0 0.0
    %1181 = vmatprep.subr.mxu0 0.0
    %1182 = vmatpush1.msra.mxu0 0.0
    %1183 = vmatprep.subr.mxu0 0.0
    %1184 = vmatpush1.msra.mxu0 0.0
    %1185 = vmatprep.subr.mxu0 0.0
    %1186 = vmatpush1.msra.mxu0 0.0
    %1187 = vmatprep.subr.mxu0 0.0
    %1188 = vmatpush1.msra.mxu0 0.0
    %1189 = vmatprep.subr.mxu0 0.0
    %1190 = vmatpush1.msra.mxu0 0.0
    %1191 = vmatprep.subr.mxu0 0.0
    %1192 = vmatpush1.msra.mxu0 0.0
    %1193 = vmatprep.subr.mxu0 0.0
    %1194 = vmatpush1.msra.mxu0 0.0
    %1195 = vmatprep.subr.mxu0 0.0
    %1196 = vmatpush1.msra.mxu0 0.0
    %1197 = vmatprep.mubr.f32.mxu0 0.0
    %1198 = vmatmul.mubr.f32.gmra.mrb[0].mxu0 %v940
    %v1199 = vpop.f32.mrb[0].mxu0
    %v1200 = vadd.f32 %v1055, %v1199
    %v1201 = vpop.f32.mrb[0].mxu0
    %1202 = vmatprep.mubr.f32.mxu0 0.0
    %1203 = vmatmul.mubr.f32.gmra.mrb[0].mxu0 %v941
    %v1204 = vpop.f32.mrb[0].mxu0
    %v1205 = vadd.f32 %v1060, %v1204
    %v1206 = vpop.f32.mrb[0].mxu0
    %1207 = vmatprep.mubr.f32.mxu0 0.0
    %1208 = vmatmul.mubr.f32.gmra.mrb[0].mxu0 %v942
    %v1209 = vpop.f32.mrb[0].mxu0
    %v1210 = vadd.f32 %v1065, %v1209
    %v1211 = vpop.f32.mrb[0].mxu0
    %1212 = vmatprep.mubr.f32.mxu0 0.0
    %1213 = vmatmul.mubr.f32.gmra.mrb[0].mxu0 %v943
    %v1214 = vpop.f32.mrb[0].mxu0
    %v1215 = vadd.f32 %v1070, %v1214
    %v1216 = vpop.f32.mrb[0].mxu0
    %1217 = vmatprep.mubr.f32.mxu0 0.0
    %1218 = vmatmul.mubr.f32.gmra.mrb[0].mxu0 %v944
    %v1219 = vpop.f32.mrb[0].mxu0
    %v1220 = vadd.f32 %v1075, %v1219
    %v1221 = vpop.f32.mrb[0].mxu0
    %1222 = vmatprep.mubr.f32.mxu0 0.0
    %1223 = vmatmul.mubr.f32.gmra.mrb[0].mxu0 %v945
    %v1224 = vpop.f32.mrb[0].mxu0
    %v1225 = vadd.f32 %v1080, %v1224
    %v1226 = vpop.f32.mrb[0].mxu0
    %1227 = vmatprep.mubr.f32.mxu0 0.0
    %1228 = vmatmul.mubr.f32.gmra.mrb[0].mxu0 %v946
    %v1229 = vpop.f32.mrb[0].mxu0
    %v1230 = vadd.f32 %v1085, %v1229
    %v1231 = vpop.f32.mrb[0].mxu0
    %1232 = vmatprep.mubr.f32.mxu0 0.0
    %1233 = vmatmul.mubr.f32.gmra.mrb[0].mxu0 %v947
    %v1234 = vpop.f32.mrb[0].mxu0
    %v1235 = vadd.f32 %v1090, %v1234
    %v1236 = vpop.f32.mrb[0].mxu0
    %1237 = vmatprep.mubr.f32.mxu0 0.0
    %1238 = vmatmul.mubr.f32.gmra.mrb[0].mxu0 %v948
    %v1239 = vpop.f32.mrb[0].mxu0
    %v1240 = vadd.f32 %v1095, %v1239
    %v1241 = vpop.f32.mrb[0].mxu0
    %1242 = vmatprep.mubr.f32.mxu0 0.0
    %1243 = vmatmul.mubr.f32.gmra.mrb[0].mxu0 %v949
    %v1244 = vpop.f32.mrb[0].mxu0
    %v1245 = vadd.f32 %v1100, %v1244
    %v1246 = vpop.f32.mrb[0].mxu0
    %1247 = vmatprep.mubr.f32.mxu0 0.0
    %1248 = vmatmul.mubr.f32.gmra.mrb[0].mxu0 %v950
    %v1249 = vpop.f32.mrb[0].mxu0
    %v1250 = vadd.f32 %v1105, %v1249
    %v1251 = vpop.f32.mrb[0].mxu0
    %1252 = vmatprep.mubr.f32.mxu0 0.0
    %1253 = vmatmul.mubr.f32.gmra.mrb[0].mxu0 %v951
    %v1254 = vpop.f32.mrb[0].mxu0
    %v1255 = vadd.f32 %v1110, %v1254
    %v1256 = vpop.f32.mrb[0].mxu0
    %1257 = vmatprep.mubr.f32.mxu0 0.0
    %1258 = vmatmul.mubr.f32.gmra.mrb[0].mxu0 %v952
    %v1259 = vpop.f32.mrb[0].mxu0
    %v1260 = vadd.f32 %v1115, %v1259
    %v1261 = vpop.f32.mrb[0].mxu0
    %1262 = vmatprep.mubr.f32.mxu0 0.0
    %1263 = vmatmul.mubr.f32.gmra.mrb[0].mxu0 %v953
    %v1264 = vpop.f32.mrb[0].mxu0
    %v1265 = vadd.f32 %v1120, %v1264
    %v1266 = vpop.f32.mrb[0].mxu0
    %1267 = vmatprep.mubr.f32.mxu0 0.0
    %1268 = vmatmul.mubr.f32.gmra.mrb[0].mxu0 %v954
    %v1269 = vpop.f32.mrb[0].mxu0
    %v1270 = vadd.f32 %v1125, %v1269
    %v1271 = vpop.f32.mrb[0].mxu0
    %1272 = vmatprep.mubr.f32.mxu0 0.0
    %1273 = vmatmul.mubr.f32.gmra.mrb[0].mxu0 %v955
    %v1274 = vpop.f32.mrb[0].mxu0
    %v1275 = vadd.f32 %v1130, %v1274
    %v1276 = vpop.f32.mrb[0].mxu0
    %1277 = vdwg.mxu0
    %v1278 = vld [vmem:[%s9] sm:$0x1]
    %v1280 = vlaneseq
    %v1281 = vshrl.u32 %v1280, 7
    %v1282 = vsub.s32 0, %v1281
    %v1283 = vrot.slane %v1278, %v1282
    %v1285 = vadd.f32 %v1200, %v1283
    %v1286 = vadd.f32 %v1205, %v1283
    %v1287 = vadd.f32 %v1210, %v1283
    %v1288 = vadd.f32 %v1215, %v1283
    %v1289 = vadd.f32 %v1220, %v1283
    %v1290 = vadd.f32 %v1225, %v1283
    %v1291 = vadd.f32 %v1230, %v1283
    %v1292 = vadd.f32 %v1235, %v1283
    %v1293 = vadd.f32 %v1240, %v1283
    %v1294 = vadd.f32 %v1245, %v1283
    %v1295 = vadd.f32 %v1250, %v1283
    %v1296 = vadd.f32 %v1255, %v1283
    %v1297 = vadd.f32 %v1260, %v1283
    %v1298 = vadd.f32 %v1265, %v1283
    %v1299 = vadd.f32 %v1270, %v1283
    %v1300 = vadd.f32 %v1275, %v1283
    %v1301 = vxor.u32 %v1285, 2147483648
    %v1302 = vxor.u32 %v1286, 2147483648
    %v1303 = vxor.u32 %v1287, 2147483648
    %v1304 = vxor.u32 %v1288, 2147483648
    %v1305 = vxor.u32 %v1289, 2147483648
    %v1306 = vxor.u32 %v1290, 2147483648
    %v1307 = vxor.u32 %v1291, 2147483648
    %v1308 = vxor.u32 %v1292, 2147483648
    %v1309 = vxor.u32 %v1293, 2147483648
    %v1310 = vxor.u32 %v1294, 2147483648
    %v1311 = vxor.u32 %v1295, 2147483648
    %v1312 = vxor.u32 %v1296, 2147483648
    %v1313 = vxor.u32 %v1297, 2147483648
    %v1314 = vxor.u32 %v1298, 2147483648
    %v1315 = vxor.u32 %v1299, 2147483648
    %v1316 = vxor.u32 %v1300, 2147483648
    %v1317 = vmul.f32 %v1301, 1.442695
    %v1318 = vpow.pop %v1317
    %v1319 = vmul.f32 %v1302, 1.442695
    %v1320 = vpow.pop %v1319
    %v1321 = vmul.f32 %v1303, 1.442695
    %v1322 = vpow.pop %v1321
    %v1323 = vmul.f32 %v1304, 1.442695
    %v1324 = vpow.pop %v1323
    %v1325 = vmul.f32 %v1305, 1.442695
    %v1326 = vpow.pop %v1325
    %v1327 = vmul.f32 %v1306, 1.442695
    %v1328 = vpow.pop %v1327
    %v1329 = vmul.f32 %v1307, 1.442695
    %v1330 = vpow.pop %v1329
    %v1331 = vmul.f32 %v1308, 1.442695
    %v1332 = vpow.pop %v1331
    %v1333 = vmul.f32 %v1309, 1.442695
    %v1334 = vpow.pop %v1333
    %v1335 = vmul.f32 %v1310, 1.442695
    %v1336 = vpow.pop %v1335
    %v1337 = vmul.f32 %v1311, 1.442695
    %v1338 = vpow.pop %v1337
    %v1339 = vmul.f32 %v1312, 1.442695
    %v1340 = vpow.pop %v1339
    %v1341 = vmul.f32 %v1313, 1.442695
    %v1342 = vpow.pop %v1341
    %v1343 = vmul.f32 %v1314, 1.442695
    %v1344 = vpow.pop %v1343
    %v1345 = vmul.f32 %v1315, 1.442695
    %v1346 = vpow.pop %v1345
    %v1347 = vmul.f32 %v1316, 1.442695
    %v1348 = vpow.pop %v1347
    %v1349 = vadd.f32 %v1318, 1.0
    %v1350 = vadd.f32 %v1320, 1.0
    %v1351 = vadd.f32 %v1322, 1.0
    %v1352 = vadd.f32 %v1324, 1.0
    %v1353 = vadd.f32 %v1326, 1.0
    %v1354 = vadd.f32 %v1328, 1.0
    %v1355 = vadd.f32 %v1330, 1.0
    %v1356 = vadd.f32 %v1332, 1.0
    %v1357 = vadd.f32 %v1334, 1.0
    %v1358 = vadd.f32 %v1336, 1.0
    %v1359 = vadd.f32 %v1338, 1.0
    %v1360 = vadd.f32 %v1340, 1.0
    %v1361 = vadd.f32 %v1342, 1.0
    %v1362 = vadd.f32 %v1344, 1.0
    %v1363 = vadd.f32 %v1346, 1.0
    %v1364 = vadd.f32 %v1348, 1.0
    %v1365 = vrcp.pop %v1349
    %v1366 = vmul.f32 1.0, %v1365
    %v1367 = vrcp.pop %v1350
    %v1368 = vmul.f32 1.0, %v1367
    %v1369 = vrcp.pop %v1351
    %v1370 = vmul.f32 1.0, %v1369
    %v1371 = vrcp.pop %v1352
    %v1372 = vmul.f32 1.0, %v1371
    %v1373 = vrcp.pop %v1353
    %v1374 = vmul.f32 1.0, %v1373
    %v1375 = vrcp.pop %v1354
    %v1376 = vmul.f32 1.0, %v1375
    %v1377 = vrcp.pop %v1355
    %v1378 = vmul.f32 1.0, %v1377
    %v1379 = vrcp.pop %v1356
    %v1380 = vmul.f32 1.0, %v1379
    %v1381 = vrcp.pop %v1357
    %v1382 = vmul.f32 1.0, %v1381
    %v1383 = vrcp.pop %v1358
    %v1384 = vmul.f32 1.0, %v1383
    %v1385 = vrcp.pop %v1359
    %v1386 = vmul.f32 1.0, %v1385
    %v1387 = vrcp.pop %v1360
    %v1388 = vmul.f32 1.0, %v1387
    %v1389 = vrcp.pop %v1361
    %v1390 = vmul.f32 1.0, %v1389
    %v1391 = vrcp.pop %v1362
    %v1392 = vmul.f32 1.0, %v1391
    %v1393 = vrcp.pop %v1363
    %v1394 = vmul.f32 1.0, %v1393
    %v1395 = vrcp.pop %v1364
    %v1396 = vmul.f32 1.0, %v1395
    %v1397 = vmul.f32 %v1285, %v1366
    %v1398 = vmul.f32 %v1286, %v1368
    %v1399 = vmul.f32 %v1287, %v1370
    %v1400 = vmul.f32 %v1288, %v1372
    %v1401 = vmul.f32 %v1289, %v1374
    %v1402 = vmul.f32 %v1290, %v1376
    %v1403 = vmul.f32 %v1291, %v1378
    %v1404 = vmul.f32 %v1292, %v1380
    %v1405 = vmul.f32 %v1293, %v1382
    %v1406 = vmul.f32 %v1294, %v1384
    %v1407 = vmul.f32 %v1295, %v1386
    %v1408 = vmul.f32 %v1296, %v1388
    %v1409 = vmul.f32 %v1297, %v1390
    %v1410 = vmul.f32 %v1298, %v1392
    %v1411 = vmul.f32 %v1299, %v1394
    %v1412 = vmul.f32 %v1300, %v1396
    %v1413 = vld [vmem:[#allocation14] sm:$0xff]
    %v1414 = vld [vmem:[#allocation14 + $0x8] sm:$0xff]
    %v1415 = vld [vmem:[#allocation14 + $0x10] sm:$0xff]
    %v1416 = vld [vmem:[#allocation14 + $0x18] sm:$0xff]
    %v1417 = vld [vmem:[#allocation14 + $0x20] sm:$0xff]
    %v1418 = vld [vmem:[#allocation14 + $0x28] sm:$0xff]
    %v1419 = vld [vmem:[#allocation14 + $0x30] sm:$0xff]
    %v1420 = vld [vmem:[#allocation14 + $0x38] sm:$0xff]
    %v1421 = vld [vmem:[#allocation14 + $0x40] sm:$0xff]
    %v1422 = vld [vmem:[#allocation14 + $0x48] sm:$0xff]
    %v1423 = vld [vmem:[#allocation14 + $0x50] sm:$0xff]
    %v1424 = vld [vmem:[#allocation14 + $0x58] sm:$0xff]
    %v1425 = vld [vmem:[#allocation14 + $0x60] sm:$0xff]
    %v1426 = vld [vmem:[#allocation14 + $0x68] sm:$0xff]
    %v1427 = vld [vmem:[#allocation14 + $0x70] sm:$0xff]
    %v1428 = vld [vmem:[#allocation14 + $0x78] sm:$0xff]
    %v1429 = vld [vmem:[%s11] sm:$0x1]
    %v1431 = vlaneseq
    %v1432 = vshrl.u32 %v1431, 7
    %v1433 = vsub.s32 0, %v1432
    %v1434 = vrot.slane %v1429, %v1433
    %1436 = vmatprep.subr.mxu0 0.0
    %1437 = vmatpush1.msra.mxu0 %v1413
    %1438 = vmatprep.subr.mxu0 0.0
    %1439 = vmatpush1.msra.mxu0 %v1414
    %1440 = vmatprep.subr.mxu0 0.0
    %1441 = vmatpush1.msra.mxu0 %v1415
    %1442 = vmatprep.subr.mxu0 0.0
    %1443 = vmatpush1.msra.mxu0 %v1416
    %1444 = vmatprep.subr.mxu0 0.0
    %1445 = vmatpush1.msra.mxu0 %v1417
    %1446 = vmatprep.subr.mxu0 0.0
    %1447 = vmatpush1.msra.mxu0 %v1418
    %1448 = vmatprep.subr.mxu0 0.0
    %1449 = vmatpush1.msra.mxu0 %v1419
    %1450 = vmatprep.subr.mxu0 0.0
    %1451 = vmatpush1.msra.mxu0 %v1420
    %1452 = vmatprep.subr.mxu0 0.0
    %1453 = vmatpush1.msra.mxu0 %v1421
    %1454 = vmatprep.subr.mxu0 0.0
    %1455 = vmatpush1.msra.mxu0 %v1422
    %1456 = vmatprep.subr.mxu0 0.0
    %1457 = vmatpush1.msra.mxu0 %v1423
    %1458 = vmatprep.subr.mxu0 0.0
    %1459 = vmatpush1.msra.mxu0 %v1424
    %1460 = vmatprep.subr.mxu0 0.0
    %1461 = vmatpush1.msra.mxu0 %v1425
    %1462 = vmatprep.subr.mxu0 0.0
    %1463 = vmatpush1.msra.mxu0 %v1426
    %1464 = vmatprep.subr.mxu0 0.0
    %1465 = vmatpush1.msra.mxu0 %v1427
    %1466 = vmatprep.subr.mxu0 0.0
    %1467 = vmatpush1.msra.mxu0 %v1428
    %1468 = vmatprep.subr.mxu0 0.0
    %1469 = vmatpush1.msra.mxu0 0.0
    %1470 = vmatprep.subr.mxu0 0.0
    %1471 = vmatpush1.msra.mxu0 0.0
    %1472 = vmatprep.subr.mxu0 0.0
    %1473 = vmatpush1.msra.mxu0 0.0
    %1474 = vmatprep.subr.mxu0 0.0
    %1475 = vmatpush1.msra.mxu0 0.0
    %1476 = vmatprep.subr.mxu0 0.0
    %1477 = vmatpush1.msra.mxu0 0.0
    %1478 = vmatprep.subr.mxu0 0.0
    %1479 = vmatpush1.msra.mxu0 0.0
    %1480 = vmatprep.subr.mxu0 0.0
    %1481 = vmatpush1.msra.mxu0 0.0
    %1482 = vmatprep.subr.mxu0 0.0
    %1483 = vmatpush1.msra.mxu0 0.0
    %1484 = vmatprep.subr.mxu0 0.0
    %1485 = vmatpush1.msra.mxu0 0.0
    %1486 = vmatprep.subr.mxu0 0.0
    %1487 = vmatpush1.msra.mxu0 0.0
    %1488 = vmatprep.subr.mxu0 0.0
    %1489 = vmatpush1.msra.mxu0 0.0
    %1490 = vmatprep.subr.mxu0 0.0
    %1491 = vmatpush1.msra.mxu0 0.0
    %1492 = vmatprep.subr.mxu0 0.0
    %1493 = vmatpush1.msra.mxu0 0.0
    %1494 = vmatprep.subr.mxu0 0.0
    %1495 = vmatpush1.msra.mxu0 0.0
    %1496 = vmatprep.subr.mxu0 0.0
    %1497 = vmatpush1.msra.mxu0 0.0
    %1498 = vmatprep.subr.mxu0 0.0
    %1499 = vmatpush1.msra.mxu0 0.0
    %1500 = vmatprep.mubr.f32.mxu0 0.0
    %1501 = vmatmul.mubr.f32.gmra.mrb[0].mxu0 %v1397
    %v1502 = vpop.f32.mrb[0].mxu0
    %v1503 = vadd.f32 %v1434, %v1502
    %v1504 = vpop.f32.mrb[0].mxu0
    %1505 = vmatprep.mubr.f32.mxu0 0.0
    %1506 = vmatmul.mubr.f32.gmra.mrb[0].mxu0 %v1398
    %v1507 = vpop.f32.mrb[0].mxu0
    %v1508 = vadd.f32 %v1434, %v1507
    %v1509 = vpop.f32.mrb[0].mxu0
    %1510 = vmatprep.mubr.f32.mxu0 0.0
    %1511 = vmatmul.mubr.f32.gmra.mrb[0].mxu0 %v1399
    %v1512 = vpop.f32.mrb[0].mxu0
    %v1513 = vadd.f32 %v1434, %v1512
    %v1514 = vpop.f32.mrb[0].mxu0
    %1515 = vmatprep.mubr.f32.mxu0 0.0
    %1516 = vmatmul.mubr.f32.gmra.mrb[0].mxu0 %v1400
    %v1517 = vpop.f32.mrb[0].mxu0
    %v1518 = vadd.f32 %v1434, %v1517
    %v1519 = vpop.f32.mrb[0].mxu0
    %1520 = vmatprep.mubr.f32.mxu0 0.0
    %1521 = vmatmul.mubr.f32.gmra.mrb[0].mxu0 %v1401
    %v1522 = vpop.f32.mrb[0].mxu0
    %v1523 = vadd.f32 %v1434, %v1522
    %v1524 = vpop.f32.mrb[0].mxu0
    %1525 = vmatprep.mubr.f32.mxu0 0.0
    %1526 = vmatmul.mubr.f32.gmra.mrb[0].mxu0 %v1402
    %v1527 = vpop.f32.mrb[0].mxu0
    %v1528 = vadd.f32 %v1434, %v1527
    %v1529 = vpop.f32.mrb[0].mxu0
    %1530 = vmatprep.mubr.f32.mxu0 0.0
    %1531 = vmatmul.mubr.f32.gmra.mrb[0].mxu0 %v1403
    %v1532 = vpop.f32.mrb[0].mxu0
    %v1533 = vadd.f32 %v1434, %v1532
    %v1534 = vpop.f32.mrb[0].mxu0
    %1535 = vmatprep.mubr.f32.mxu0 0.0
    %1536 = vmatmul.mubr.f32.gmra.mrb[0].mxu0 %v1404
    %v1537 = vpop.f32.mrb[0].mxu0
    %v1538 = vadd.f32 %v1434, %v1537
    %v1539 = vpop.f32.mrb[0].mxu0
    %1540 = vmatprep.mubr.f32.mxu0 0.0
    %1541 = vmatmul.mubr.f32.gmra.mrb[0].mxu0 %v1405
    %v1542 = vpop.f32.mrb[0].mxu0
    %v1543 = vadd.f32 %v1434, %v1542
    %v1544 = vpop.f32.mrb[0].mxu0
    %1545 = vmatprep.mubr.f32.mxu0 0.0
    %1546 = vmatmul.mubr.f32.gmra.mrb[0].mxu0 %v1406
    %v1547 = vpop.f32.mrb[0].mxu0
    %v1548 = vadd.f32 %v1434, %v1547
    %v1549 = vpop.f32.mrb[0].mxu0
    %1550 = vmatprep.mubr.f32.mxu0 0.0
    %1551 = vmatmul.mubr.f32.gmra.mrb[0].mxu0 %v1407
    %v1552 = vpop.f32.mrb[0].mxu0
    %v1553 = vadd.f32 %v1434, %v1552
    %v1554 = vpop.f32.mrb[0].mxu0
    %1555 = vmatprep.mubr.f32.mxu0 0.0
    %1556 = vmatmul.mubr.f32.gmra.mrb[0].mxu0 %v1408
    %v1557 = vpop.f32.mrb[0].mxu0
    %v1558 = vadd.f32 %v1434, %v1557
    %v1559 = vpop.f32.mrb[0].mxu0
    %1560 = vmatprep.mubr.f32.mxu0 0.0
    %1561 = vmatmul.mubr.f32.gmra.mrb[0].mxu0 %v1409
    %v1562 = vpop.f32.mrb[0].mxu0
    %v1563 = vadd.f32 %v1434, %v1562
    %v1564 = vpop.f32.mrb[0].mxu0
    %1565 = vmatprep.mubr.f32.mxu0 0.0
    %1566 = vmatmul.mubr.f32.gmra.mrb[0].mxu0 %v1410
    %v1567 = vpop.f32.mrb[0].mxu0
    %v1568 = vadd.f32 %v1434, %v1567
    %v1569 = vpop.f32.mrb[0].mxu0
    %1570 = vmatprep.mubr.f32.mxu0 0.0
    %1571 = vmatmul.mubr.f32.gmra.mrb[0].mxu0 %v1411
    %v1572 = vpop.f32.mrb[0].mxu0
    %v1573 = vadd.f32 %v1434, %v1572
    %v1574 = vpop.f32.mrb[0].mxu0
    %1575 = vmatprep.mubr.f32.mxu0 0.0
    %1576 = vmatmul.mubr.f32.gmra.mrb[0].mxu0 %v1412
    %v1577 = vpop.f32.mrb[0].mxu0
    %v1578 = vadd.f32 %v1434, %v1577
    %v1579 = vpop.f32.mrb[0].mxu0
    %1580 = vdwg.mxu0
    %v1581 = vxor.u32 %v1503, 2147483648
    %v1582 = vxor.u32 %v1508, 2147483648
    %v1583 = vxor.u32 %v1513, 2147483648
    %v1584 = vxor.u32 %v1518, 2147483648
    %v1585 = vxor.u32 %v1523, 2147483648
    %v1586 = vxor.u32 %v1528, 2147483648
    %v1587 = vxor.u32 %v1533, 2147483648
    %v1588 = vxor.u32 %v1538, 2147483648
    %v1589 = vxor.u32 %v1543, 2147483648
    %v1590 = vxor.u32 %v1548, 2147483648
    %v1591 = vxor.u32 %v1553, 2147483648
    %v1592 = vxor.u32 %v1558, 2147483648
    %v1593 = vxor.u32 %v1563, 2147483648
    %v1594 = vxor.u32 %v1568, 2147483648
    %v1595 = vxor.u32 %v1573, 2147483648
    %v1596 = vxor.u32 %v1578, 2147483648
    %v1597 = vmul.f32 %v1581, 1.442695
    %v1598 = vpow.pop %v1597
    %v1599 = vmul.f32 %v1582, 1.442695
    %v1600 = vpow.pop %v1599
    %v1601 = vmul.f32 %v1583, 1.442695
    %v1602 = vpow.pop %v1601
    %v1603 = vmul.f32 %v1584, 1.442695
    %v1604 = vpow.pop %v1603
    %v1605 = vmul.f32 %v1585, 1.442695
    %v1606 = vpow.pop %v1605
    %v1607 = vmul.f32 %v1586, 1.442695
    %v1608 = vpow.pop %v1607
    %v1609 = vmul.f32 %v1587, 1.442695
    %v1610 = vpow.pop %v1609
    %v1611 = vmul.f32 %v1588, 1.442695
    %v1612 = vpow.pop %v1611
    %v1613 = vmul.f32 %v1589, 1.442695
    %v1614 = vpow.pop %v1613
    %v1615 = vmul.f32 %v1590, 1.442695
    %v1616 = vpow.pop %v1615
    %v1617 = vmul.f32 %v1591, 1.442695
    %v1618 = vpow.pop %v1617
    %v1619 = vmul.f32 %v1592, 1.442695
    %v1620 = vpow.pop %v1619
    %v1621 = vmul.f32 %v1593, 1.442695
    %v1622 = vpow.pop %v1621
    %v1623 = vmul.f32 %v1594, 1.442695
    %v1624 = vpow.pop %v1623
    %v1625 = vmul.f32 %v1595, 1.442695
    %v1626 = vpow.pop %v1625
    %v1627 = vmul.f32 %v1596, 1.442695
    %v1628 = vpow.pop %v1627
    %v1629 = vadd.f32 %v1598, 1.0
    %v1630 = vadd.f32 %v1600, 1.0
    %v1631 = vadd.f32 %v1602, 1.0
    %v1632 = vadd.f32 %v1604, 1.0
    %v1633 = vadd.f32 %v1606, 1.0
    %v1634 = vadd.f32 %v1608, 1.0
    %v1635 = vadd.f32 %v1610, 1.0
    %v1636 = vadd.f32 %v1612, 1.0
    %v1637 = vadd.f32 %v1614, 1.0
    %v1638 = vadd.f32 %v1616, 1.0
    %v1639 = vadd.f32 %v1618, 1.0
    %v1640 = vadd.f32 %v1620, 1.0
    %v1641 = vadd.f32 %v1622, 1.0
    %v1642 = vadd.f32 %v1624, 1.0
    %v1643 = vadd.f32 %v1626, 1.0
    %v1644 = vadd.f32 %v1628, 1.0
    %v1645 = vrcp.pop %v1629
    %v1646 = vmul.f32 1.0, %v1645
    %v1647 = vrcp.pop %v1630
    %v1648 = vmul.f32 1.0, %v1647
    %v1649 = vrcp.pop %v1631
    %v1650 = vmul.f32 1.0, %v1649
    %v1651 = vrcp.pop %v1632
    %v1652 = vmul.f32 1.0, %v1651
    %v1653 = vrcp.pop %v1633
    %v1654 = vmul.f32 1.0, %v1653
    %v1655 = vrcp.pop %v1634
    %v1656 = vmul.f32 1.0, %v1655
    %v1657 = vrcp.pop %v1635
    %v1658 = vmul.f32 1.0, %v1657
    %v1659 = vrcp.pop %v1636
    %v1660 = vmul.f32 1.0, %v1659
    %v1661 = vrcp.pop %v1637
    %v1662 = vmul.f32 1.0, %v1661
    %v1663 = vrcp.pop %v1638
    %v1664 = vmul.f32 1.0, %v1663
    %v1665 = vrcp.pop %v1639
    %v1666 = vmul.f32 1.0, %v1665
    %v1667 = vrcp.pop %v1640
    %v1668 = vmul.f32 1.0, %v1667
    %v1669 = vrcp.pop %v1641
    %v1670 = vmul.f32 1.0, %v1669
    %v1671 = vrcp.pop %v1642
    %v1672 = vmul.f32 1.0, %v1671
    %v1673 = vrcp.pop %v1643
    %v1674 = vmul.f32 1.0, %v1673
    %v1675 = vrcp.pop %v1644
    %v1676 = vmul.f32 1.0, %v1675
    %v1677 = vmul.f32 %v1503, %v1646
    %v1678 = vmul.f32 %v1508, %v1648
    %v1679 = vmul.f32 %v1513, %v1650
    %v1680 = vmul.f32 %v1518, %v1652
    %v1681 = vmul.f32 %v1523, %v1654
    %v1682 = vmul.f32 %v1528, %v1656
    %v1683 = vmul.f32 %v1533, %v1658
    %v1684 = vmul.f32 %v1538, %v1660
    %v1685 = vmul.f32 %v1543, %v1662
    %v1686 = vmul.f32 %v1548, %v1664
    %v1687 = vmul.f32 %v1553, %v1666
    %v1688 = vmul.f32 %v1558, %v1668
    %v1689 = vmul.f32 %v1563, %v1670
    %v1690 = vmul.f32 %v1568, %v1672
    %v1691 = vmul.f32 %v1573, %v1674
    %v1692 = vmul.f32 %v1578, %v1676
    %v1693 = vld [vmem:[#allocation16] sm:$0xff]
    %v1694 = vld [vmem:[#allocation16 + $0x8] sm:$0xff]
    %v1695 = vld [vmem:[#allocation16 + $0x10] sm:$0xff]
    %v1696 = vld [vmem:[#allocation16 + $0x18] sm:$0xff]
    %v1697 = vld [vmem:[#allocation16 + $0x20] sm:$0xff]
    %v1698 = vld [vmem:[#allocation16 + $0x28] sm:$0xff]
    %v1699 = vld [vmem:[#allocation16 + $0x30] sm:$0xff]
    %v1700 = vld [vmem:[#allocation16 + $0x38] sm:$0xff]
    %v1701 = vld [vmem:[#allocation16 + $0x40] sm:$0xff]
    %v1702 = vld [vmem:[#allocation16 + $0x48] sm:$0xff]
    %v1703 = vld [vmem:[#allocation16 + $0x50] sm:$0xff]
    %v1704 = vld [vmem:[#allocation16 + $0x58] sm:$0xff]
    %v1705 = vld [vmem:[#allocation16 + $0x60] sm:$0xff]
    %v1706 = vld [vmem:[#allocation16 + $0x68] sm:$0xff]
    %v1707 = vld [vmem:[#allocation16 + $0x70] sm:$0xff]
    %v1708 = vld [vmem:[#allocation16 + $0x78] sm:$0xff]
    %v1709 = vld [vmem:[#allocation17] sm:$0xff]
    %v1710 = vld [vmem:[#allocation17 + $0x8] sm:$0xff]
    %v1711 = vld [vmem:[#allocation17 + $0x10] sm:$0xff]
    %v1712 = vld [vmem:[#allocation17 + $0x18] sm:$0xff]
    %v1713 = vld [vmem:[#allocation17 + $0x20] sm:$0xff]
    %v1714 = vld [vmem:[#allocation17 + $0x28] sm:$0xff]
    %v1715 = vld [vmem:[#allocation17 + $0x30] sm:$0xff]
    %v1716 = vld [vmem:[#allocation17 + $0x38] sm:$0xff]
    %v1717 = vld [vmem:[#allocation17 + $0x40] sm:$0xff]
    %v1718 = vld [vmem:[#allocation17 + $0x48] sm:$0xff]
    %v1719 = vld [vmem:[#allocation17 + $0x50] sm:$0xff]
    %v1720 = vld [vmem:[#allocation17 + $0x58] sm:$0xff]
    %v1721 = vld [vmem:[#allocation17 + $0x60] sm:$0xff]
    %v1722 = vld [vmem:[#allocation17 + $0x68] sm:$0xff]
    %v1723 = vld [vmem:[#allocation17 + $0x70] sm:$0xff]
    %v1724 = vld [vmem:[#allocation17 + $0x78] sm:$0xff]
    %1725 = vmatprep.subr.mxu0 0.0
    %1726 = vmatpush1.msra.mxu0 %v1709
    %1727 = vmatprep.subr.mxu0 0.0
    %1728 = vmatpush1.msra.mxu0 %v1710
    %1729 = vmatprep.subr.mxu0 0.0
    %1730 = vmatpush1.msra.mxu0 %v1711
    %1731 = vmatprep.subr.mxu0 0.0
    %1732 = vmatpush1.msra.mxu0 %v1712
    %1733 = vmatprep.subr.mxu0 0.0
    %1734 = vmatpush1.msra.mxu0 %v1713
    %1735 = vmatprep.subr.mxu0 0.0
    %1736 = vmatpush1.msra.mxu0 %v1714
    %1737 = vmatprep.subr.mxu0 0.0
    %1738 = vmatpush1.msra.mxu0 %v1715
    %1739 = vmatprep.subr.mxu0 0.0
    %1740 = vmatpush1.msra.mxu0 %v1716
    %1741 = vmatprep.subr.mxu0 0.0
    %1742 = vmatpush1.msra.mxu0 %v1717
    %1743 = vmatprep.subr.mxu0 0.0
    %1744 = vmatpush1.msra.mxu0 %v1718
    %1745 = vmatprep.subr.mxu0 0.0
    %1746 = vmatpush1.msra.mxu0 %v1719
    %1747 = vmatprep.subr.mxu0 0.0
    %1748 = vmatpush1.msra.mxu0 %v1720
    %1749 = vmatprep.subr.mxu0 0.0
    %1750 = vmatpush1.msra.mxu0 %v1721
    %1751 = vmatprep.subr.mxu0 0.0
    %1752 = vmatpush1.msra.mxu0 %v1722
    %1753 = vmatprep.subr.mxu0 0.0
    %1754 = vmatpush1.msra.mxu0 %v1723
    %1755 = vmatprep.subr.mxu0 0.0
    %1756 = vmatpush1.msra.mxu0 %v1724
    %1757 = vmatprep.subr.mxu0 0.0
    %1758 = vmatpush1.msra.mxu0 0.0
    %1759 = vmatprep.subr.mxu0 0.0
    %1760 = vmatpush1.msra.mxu0 0.0
    %1761 = vmatprep.subr.mxu0 0.0
    %1762 = vmatpush1.msra.mxu0 0.0
    %1763 = vmatprep.subr.mxu0 0.0
    %1764 = vmatpush1.msra.mxu0 0.0
    %1765 = vmatprep.subr.mxu0 0.0
    %1766 = vmatpush1.msra.mxu0 0.0
    %1767 = vmatprep.subr.mxu0 0.0
    %1768 = vmatpush1.msra.mxu0 0.0
    %1769 = vmatprep.subr.mxu0 0.0
    %1770 = vmatpush1.msra.mxu0 0.0
    %1771 = vmatprep.subr.mxu0 0.0
    %1772 = vmatpush1.msra.mxu0 0.0
    %1773 = vmatprep.subr.mxu0 0.0
    %1774 = vmatpush1.msra.mxu0 0.0
    %1775 = vmatprep.subr.mxu0 0.0
    %1776 = vmatpush1.msra.mxu0 0.0
    %1777 = vmatprep.subr.mxu0 0.0
    %1778 = vmatpush1.msra.mxu0 0.0
    %1779 = vmatprep.subr.mxu0 0.0
    %1780 = vmatpush1.msra.mxu0 0.0
    %1781 = vmatprep.subr.mxu0 0.0
    %1782 = vmatpush1.msra.mxu0 0.0
    %1783 = vmatprep.subr.mxu0 0.0
    %1784 = vmatpush1.msra.mxu0 0.0
    %1785 = vmatprep.subr.mxu0 0.0
    %1786 = vmatpush1.msra.mxu0 0.0
    %1787 = vmatprep.subr.mxu0 0.0
    %1788 = vmatpush1.msra.mxu0 0.0
    %1789 = vmatprep.mubr.f32.mxu0 0.0
    %1790 = vmatmul.mubr.f32.gmra.mrb[0].mxu0 %v203
    %v1791 = vpop.f32.mrb[0].mxu0
    %v1792 = vadd.f32 0.0, %v1791
    %v1793 = vpop.f32.mrb[0].mxu0
    %1794 = vmatprep.mubr.f32.mxu0 0.0
    %1795 = vmatmul.mubr.f32.gmra.mrb[0].mxu0 %v204
    %v1796 = vpop.f32.mrb[0].mxu0
    %v1797 = vadd.f32 0.0, %v1796
    %v1798 = vpop.f32.mrb[0].mxu0
    %1799 = vmatprep.mubr.f32.mxu0 0.0
    %1800 = vmatmul.mubr.f32.gmra.mrb[0].mxu0 %v205
    %v1801 = vpop.f32.mrb[0].mxu0
    %v1802 = vadd.f32 0.0, %v1801
    %v1803 = vpop.f32.mrb[0].mxu0
    %1804 = vmatprep.mubr.f32.mxu0 0.0
    %1805 = vmatmul.mubr.f32.gmra.mrb[0].mxu0 %v206
    %v1806 = vpop.f32.mrb[0].mxu0
    %v1807 = vadd.f32 0.0, %v1806
    %v1808 = vpop.f32.mrb[0].mxu0
    %1809 = vmatprep.mubr.f32.mxu0 0.0
    %1810 = vmatmul.mubr.f32.gmra.mrb[0].mxu0 %v207
    %v1811 = vpop.f32.mrb[0].mxu0
    %v1812 = vadd.f32 0.0, %v1811
    %v1813 = vpop.f32.mrb[0].mxu0
    %1814 = vmatprep.mubr.f32.mxu0 0.0
    %1815 = vmatmul.mubr.f32.gmra.mrb[0].mxu0 %v208
    %v1816 = vpop.f32.mrb[0].mxu0
    %v1817 = vadd.f32 0.0, %v1816
    %v1818 = vpop.f32.mrb[0].mxu0
    %1819 = vmatprep.mubr.f32.mxu0 0.0
    %1820 = vmatmul.mubr.f32.gmra.mrb[0].mxu0 %v209
    %v1821 = vpop.f32.mrb[0].mxu0
    %v1822 = vadd.f32 0.0, %v1821
    %v1823 = vpop.f32.mrb[0].mxu0
    %1824 = vmatprep.mubr.f32.mxu0 0.0
    %1825 = vmatmul.mubr.f32.gmra.mrb[0].mxu0 %v210
    %v1826 = vpop.f32.mrb[0].mxu0
    %v1827 = vadd.f32 0.0, %v1826
    %v1828 = vpop.f32.mrb[0].mxu0
    %1829 = vmatprep.mubr.f32.mxu0 0.0
    %1830 = vmatmul.mubr.f32.gmra.mrb[0].mxu0 %v211
    %v1831 = vpop.f32.mrb[0].mxu0
    %v1832 = vadd.f32 0.0, %v1831
    %v1833 = vpop.f32.mrb[0].mxu0
    %1834 = vmatprep.mubr.f32.mxu0 0.0
    %1835 = vmatmul.mubr.f32.gmra.mrb[0].mxu0 %v212
    %v1836 = vpop.f32.mrb[0].mxu0
    %v1837 = vadd.f32 0.0, %v1836
    %v1838 = vpop.f32.mrb[0].mxu0
    %1839 = vmatprep.mubr.f32.mxu0 0.0
    %1840 = vmatmul.mubr.f32.gmra.mrb[0].mxu0 %v213
    %v1841 = vpop.f32.mrb[0].mxu0
    %v1842 = vadd.f32 0.0, %v1841
    %v1843 = vpop.f32.mrb[0].mxu0
    %1844 = vmatprep.mubr.f32.mxu0 0.0
    %1845 = vmatmul.mubr.f32.gmra.mrb[0].mxu0 %v214
    %v1846 = vpop.f32.mrb[0].mxu0
    %v1847 = vadd.f32 0.0, %v1846
    %v1848 = vpop.f32.mrb[0].mxu0
    %1849 = vmatprep.mubr.f32.mxu0 0.0
    %1850 = vmatmul.mubr.f32.gmra.mrb[0].mxu0 %v215
    %v1851 = vpop.f32.mrb[0].mxu0
    %v1852 = vadd.f32 0.0, %v1851
    %v1853 = vpop.f32.mrb[0].mxu0
    %1854 = vmatprep.mubr.f32.mxu0 0.0
    %1855 = vmatmul.mubr.f32.gmra.mrb[0].mxu0 %v216
    %v1856 = vpop.f32.mrb[0].mxu0
    %v1857 = vadd.f32 0.0, %v1856
    %v1858 = vpop.f32.mrb[0].mxu0
    %1859 = vmatprep.mubr.f32.mxu0 0.0
    %1860 = vmatmul.mubr.f32.gmra.mrb[0].mxu0 %v217
    %v1861 = vpop.f32.mrb[0].mxu0
    %v1862 = vadd.f32 0.0, %v1861
    %v1863 = vpop.f32.mrb[0].mxu0
    %1864 = vmatprep.mubr.f32.mxu0 0.0
    %1865 = vmatmul.mubr.f32.gmra.mrb[0].mxu0 %v218
    %v1866 = vpop.f32.mrb[0].mxu0
    %v1867 = vadd.f32 0.0, %v1866
    %v1868 = vpop.f32.mrb[0].mxu0
    %1869 = vdwg.mxu0
    %1870 = vmatprep.subr.mxu0 0.0
    %1871 = vmatpush1.msra.mxu0 %v1693
    %1872 = vmatprep.subr.mxu0 0.0
    %1873 = vmatpush1.msra.mxu0 %v1694
    %1874 = vmatprep.subr.mxu0 0.0
    %1875 = vmatpush1.msra.mxu0 %v1695
    %1876 = vmatprep.subr.mxu0 0.0
    %1877 = vmatpush1.msra.mxu0 %v1696
    %1878 = vmatprep.subr.mxu0 0.0
    %1879 = vmatpush1.msra.mxu0 %v1697
    %1880 = vmatprep.subr.mxu0 0.0
    %1881 = vmatpush1.msra.mxu0 %v1698
    %1882 = vmatprep.subr.mxu0 0.0
    %1883 = vmatpush1.msra.mxu0 %v1699
    %1884 = vmatprep.subr.mxu0 0.0
    %1885 = vmatpush1.msra.mxu0 %v1700
    %1886 = vmatprep.subr.mxu0 0.0
    %1887 = vmatpush1.msra.mxu0 %v1701
    %1888 = vmatprep.subr.mxu0 0.0
    %1889 = vmatpush1.msra.mxu0 %v1702
    %1890 = vmatprep.subr.mxu0 0.0
    %1891 = vmatpush1.msra.mxu0 %v1703
    %1892 = vmatprep.subr.mxu0 0.0
    %1893 = vmatpush1.msra.mxu0 %v1704
    %1894 = vmatprep.subr.mxu0 0.0
    %1895 = vmatpush1.msra.mxu0 %v1705
    %1896 = vmatprep.subr.mxu0 0.0
    %1897 = vmatpush1.msra.mxu0 %v1706
    %1898 = vmatprep.subr.mxu0 0.0
    %1899 = vmatpush1.msra.mxu0 %v1707
    %1900 = vmatprep.subr.mxu0 0.0
    %1901 = vmatpush1.msra.mxu0 %v1708
    %1902 = vmatprep.subr.mxu0 0.0
    %1903 = vmatpush1.msra.mxu0 0.0
    %1904 = vmatprep.subr.mxu0 0.0
    %1905 = vmatpush1.msra.mxu0 0.0
    %1906 = vmatprep.subr.mxu0 0.0
    %1907 = vmatpush1.msra.mxu0 0.0
    %1908 = vmatprep.subr.mxu0 0.0
    %1909 = vmatpush1.msra.mxu0 0.0
    %1910 = vmatprep.subr.mxu0 0.0
    %1911 = vmatpush1.msra.mxu0 0.0
    %1912 = vmatprep.subr.mxu0 0.0
    %1913 = vmatpush1.msra.mxu0 0.0
    %1914 = vmatprep.subr.mxu0 0.0
    %1915 = vmatpush1.msra.mxu0 0.0
    %1916 = vmatprep.subr.mxu0 0.0
    %1917 = vmatpush1.msra.mxu0 0.0
    %1918 = vmatprep.subr.mxu0 0.0
    %1919 = vmatpush1.msra.mxu0 0.0
    %1920 = vmatprep.subr.mxu0 0.0
    %1921 = vmatpush1.msra.mxu0 0.0
    %1922 = vmatprep.subr.mxu0 0.0
    %1923 = vmatpush1.msra.mxu0 0.0
    %1924 = vmatprep.subr.mxu0 0.0
    %1925 = vmatpush1.msra.mxu0 0.0
    %1926 = vmatprep.subr.mxu0 0.0
    %1927 = vmatpush1.msra.mxu0 0.0
    %1928 = vmatprep.subr.mxu0 0.0
    %1929 = vmatpush1.msra.mxu0 0.0
    %1930 = vmatprep.subr.mxu0 0.0
    %1931 = vmatpush1.msra.mxu0 0.0
    %1932 = vmatprep.subr.mxu0 0.0
    %1933 = vmatpush1.msra.mxu0 0.0
    %1934 = vmatprep.mubr.f32.mxu0 0.0
    %1935 = vmatmul.mubr.f32.gmra.mrb[0].mxu0 %v1677
    %v1936 = vpop.f32.mrb[0].mxu0
    %v1937 = vadd.f32 %v1792, %v1936
    %v1938 = vpop.f32.mrb[0].mxu0
    %1939 = vmatprep.mubr.f32.mxu0 0.0
    %1940 = vmatmul.mubr.f32.gmra.mrb[0].mxu0 %v1678
    %v1941 = vpop.f32.mrb[0].mxu0
    %v1942 = vadd.f32 %v1797, %v1941
    %v1943 = vpop.f32.mrb[0].mxu0
    %1944 = vmatprep.mubr.f32.mxu0 0.0
    %1945 = vmatmul.mubr.f32.gmra.mrb[0].mxu0 %v1679
    %v1946 = vpop.f32.mrb[0].mxu0
    %v1947 = vadd.f32 %v1802, %v1946
    %v1948 = vpop.f32.mrb[0].mxu0
    %1949 = vmatprep.mubr.f32.mxu0 0.0
    %1950 = vmatmul.mubr.f32.gmra.mrb[0].mxu0 %v1680
    %v1951 = vpop.f32.mrb[0].mxu0
    %v1952 = vadd.f32 %v1807, %v1951
    %v1953 = vpop.f32.mrb[0].mxu0
    %1954 = vmatprep.mubr.f32.mxu0 0.0
    %1955 = vmatmul.mubr.f32.gmra.mrb[0].mxu0 %v1681
    %v1956 = vpop.f32.mrb[0].mxu0
    %v1957 = vadd.f32 %v1812, %v1956
    %v1958 = vpop.f32.mrb[0].mxu0
    %1959 = vmatprep.mubr.f32.mxu0 0.0
    %1960 = vmatmul.mubr.f32.gmra.mrb[0].mxu0 %v1682
    %v1961 = vpop.f32.mrb[0].mxu0
    %v1962 = vadd.f32 %v1817, %v1961
    %v1963 = vpop.f32.mrb[0].mxu0
    %1964 = vmatprep.mubr.f32.mxu0 0.0
    %1965 = vmatmul.mubr.f32.gmra.mrb[0].mxu0 %v1683
    %v1966 = vpop.f32.mrb[0].mxu0
    %v1967 = vadd.f32 %v1822, %v1966
    %v1968 = vpop.f32.mrb[0].mxu0
    %1969 = vmatprep.mubr.f32.mxu0 0.0
    %1970 = vmatmul.mubr.f32.gmra.mrb[0].mxu0 %v1684
    %v1971 = vpop.f32.mrb[0].mxu0
    %v1972 = vadd.f32 %v1827, %v1971
    %v1973 = vpop.f32.mrb[0].mxu0
    %1974 = vmatprep.mubr.f32.mxu0 0.0
    %1975 = vmatmul.mubr.f32.gmra.mrb[0].mxu0 %v1685
    %v1976 = vpop.f32.mrb[0].mxu0
    %v1977 = vadd.f32 %v1832, %v1976
    %v1978 = vpop.f32.mrb[0].mxu0
    %1979 = vmatprep.mubr.f32.mxu0 0.0
    %1980 = vmatmul.mubr.f32.gmra.mrb[0].mxu0 %v1686
    %v1981 = vpop.f32.mrb[0].mxu0
    %v1982 = vadd.f32 %v1837, %v1981
    %v1983 = vpop.f32.mrb[0].mxu0
    %1984 = vmatprep.mubr.f32.mxu0 0.0
    %1985 = vmatmul.mubr.f32.gmra.mrb[0].mxu0 %v1687
    %v1986 = vpop.f32.mrb[0].mxu0
    %v1987 = vadd.f32 %v1842, %v1986
    %v1988 = vpop.f32.mrb[0].mxu0
    %1989 = vmatprep.mubr.f32.mxu0 0.0
    %1990 = vmatmul.mubr.f32.gmra.mrb[0].mxu0 %v1688
    %v1991 = vpop.f32.mrb[0].mxu0
    %v1992 = vadd.f32 %v1847, %v1991
    %v1993 = vpop.f32.mrb[0].mxu0
    %1994 = vmatprep.mubr.f32.mxu0 0.0
    %1995 = vmatmul.mubr.f32.gmra.mrb[0].mxu0 %v1689
    %v1996 = vpop.f32.mrb[0].mxu0
    %v1997 = vadd.f32 %v1852, %v1996
    %v1998 = vpop.f32.mrb[0].mxu0
    %1999 = vmatprep.mubr.f32.mxu0 0.0
    %2000 = vmatmul.mubr.f32.gmra.mrb[0].mxu0 %v1690
    %v2001 = vpop.f32.mrb[0].mxu0
    %v2002 = vadd.f32 %v1857, %v2001
    %v2003 = vpop.f32.mrb[0].mxu0
    %2004 = vmatprep.mubr.f32.mxu0 0.0
    %2005 = vmatmul.mubr.f32.gmra.mrb[0].mxu0 %v1691
    %v2006 = vpop.f32.mrb[0].mxu0
    %v2007 = vadd.f32 %v1862, %v2006
    %v2008 = vpop.f32.mrb[0].mxu0
    %2009 = vmatprep.mubr.f32.mxu0 0.0
    %2010 = vmatmul.mubr.f32.gmra.mrb[0].mxu0 %v1692
    %v2011 = vpop.f32.mrb[0].mxu0
    %v2012 = vadd.f32 %v1867, %v2011
    %v2013 = vpop.f32.mrb[0].mxu0
    %2014 = vdwg.mxu0
    %v2015 = vld [vmem:[%s14] sm:$0x1]
    %v2017 = vlaneseq
    %v2018 = vshrl.u32 %v2017, 7
    %v2019 = vsub.s32 0, %v2018
    %v2020 = vrot.slane %v2015, %v2019
    %v2022 = vadd.f32 %v1937, %v2020
    %v2023 = vadd.f32 %v1942, %v2020
    %v2024 = vadd.f32 %v1947, %v2020
    %v2025 = vadd.f32 %v1952, %v2020
    %v2026 = vadd.f32 %v1957, %v2020
    %v2027 = vadd.f32 %v1962, %v2020
    %v2028 = vadd.f32 %v1967, %v2020
    %v2029 = vadd.f32 %v1972, %v2020
    %v2030 = vadd.f32 %v1977, %v2020
    %v2031 = vadd.f32 %v1982, %v2020
    %v2032 = vadd.f32 %v1987, %v2020
    %v2033 = vadd.f32 %v1992, %v2020
    %v2034 = vadd.f32 %v1997, %v2020
    %v2035 = vadd.f32 %v2002, %v2020
    %v2036 = vadd.f32 %v2007, %v2020
    %v2037 = vadd.f32 %v2012, %v2020
    %2038 = vst [vmem:[#allocation19] sm:$0xff] %v2022
    %2039 = vst [vmem:[#allocation19 + $0x8] sm:$0xff] %v2023
    %2040 = vst [vmem:[#allocation19 + $0x10] sm:$0xff] %v2024
    %2041 = vst [vmem:[#allocation19 + $0x18] sm:$0xff] %v2025
    %2042 = vst [vmem:[#allocation19 + $0x20] sm:$0xff] %v2026
    %2043 = vst [vmem:[#allocation19 + $0x28] sm:$0xff] %v2027
    %2044 = vst [vmem:[#allocation19 + $0x30] sm:$0xff] %v2028
    %2045 = vst [vmem:[#allocation19 + $0x38] sm:$0xff] %v2029
    %2046 = vst [vmem:[#allocation19 + $0x40] sm:$0xff] %v2030
    %2047 = vst [vmem:[#allocation19 + $0x48] sm:$0xff] %v2031
    %2048 = vst [vmem:[#allocation19 + $0x50] sm:$0xff] %v2032
    %2049 = vst [vmem:[#allocation19 + $0x58] sm:$0xff] %v2033
    %2050 = vst [vmem:[#allocation19 + $0x60] sm:$0xff] %v2034
    %2051 = vst [vmem:[#allocation19 + $0x68] sm:$0xff] %v2035
    %2052 = vst [vmem:[#allocation19 + $0x70] sm:$0xff] %v2036
    %2053 = vst [vmem:[#allocation19 + $0x78] sm:$0xff] %v2037
    // Predicated region
    $region102: #{tpu_custom_call.1} parent=1 // pred_check
      _
    $region103: #{tpu_custom_call.1} parent=1 // pred_check_branch
      %2055 = sbr.rel (0) target = $region105
    $region104: #{tpu_custom_call.1} parent=1 // pred_region
      %s2057 = ssub.s32 2048, 2048
      %2058 = vsyncadd [#allocation4], %s2057
      %s2059 = sshll.u32 [#allocation19], 4
      %s2060 = int_to_ptr.vmem [resolvable:$true] %s2059
      %2065 = dma.vmem_to_hbm [thread:$0]  %s2060, 2048, %s15, [#allocation4], 128, 128, 8
    $region105: #{tpu_custom_call.1} parent=1 // pred_fallthru
      _
    // Predicated region
    $region106: #{tpu_custom_call.1} parent=1 // pred_check
      _
    $region107: #{tpu_custom_call.1} parent=1 // pred_check_branch
      %2067 = sbr.rel (0) target = $region109
    $region108: #{tpu_custom_call.1} parent=1 // pred_region
      %2068 = dma.done [#allocation4], 2048
    $region109: #{tpu_custom_call.1} parent=1 // pred_fallthru
      _
    %2069 = vsyncpa [#allocation3], 1
    %2070 = vsyncpa [#allocation6], 1
    %2071 = vsyncpa [#allocation9], 1
    %2072 = vsyncpa [#allocation12], 1
    %2073 = vsyncpa [#allocation15], 1
    %2074 = vsyncpa [#allocation18], 1
    %2075 = vsyncpa [#allocation4], 1

</llo_original>
